<compile_context>
chip_gen: v6e
topology: v6e:2x2x1
jax: 0.10.0
libtpu: 0.0.40
codegen_flags: <defaults>
</compile_context>

<pallas_src>
import functools

import jax
import jax.numpy as jnp
from jax import lax
from jax.experimental import pallas as pl
from jax.experimental.pallas import tpu as pltpu


# ----------------------------------------------------------------------------
# Kernels
# ----------------------------------------------------------------------------
def _decoder_kernel_two(u_ref, x_ref, w1_ref, b1_ref, w2_ref, b2_ref, o_ref, *, th, h_up):
    rows1 = th + 2  # conv1 output rows: one halo row each side for conv2

    # Bilinear H-upsample (+ conv1's H zero pad), both folded into u: (th + 4, K1p).
    xh = jnp.dot(u_ref[0], x_ref[0],
                 preferred_element_type=jnp.float32).astype(w1_ref.dtype)

    # conv1 + bias + ReLU as ONE dy-stacked matmul (K = 3*K1p).  The LHS is the three
    # row-shifted views of xh concatenated on the lane axis (128-lane aligned pieces).
    lhs = jnp.concatenate([xh[0:rows1], xh[1:rows1 + 1], xh[2:rows1 + 2]], axis=-1)
    h1 = jnp.dot(lhs, w1_ref[...], preferred_element_type=jnp.float32)
    h1 = jnp.maximum(h1 + b1_ref[...], 0.0)

    # Zero the halo rows that fall outside the image: this IS conv2's zero padding along H.
    gy = pl.program_id(1) * th - 1 + lax.broadcasted_iota(jnp.int32, (rows1, 1), 0)
    h1 = jnp.where((gy >= 0) & (gy < h_up), h1, 0.0).astype(w2_ref.dtype)

    # conv2 + bias + ReLU: K = 2W*Cmid per dy; adjacent acc += dot chain (MRB on v7x).
    acc = jnp.dot(h1[0:th], w2_ref[0], preferred_element_type=jnp.float32)
    acc = acc + jnp.dot(h1[1:th + 1], w2_ref[1], preferred_element_type=jnp.float32)
    acc = acc + jnp.dot(h1[2:th + 2], w2_ref[2], preferred_element_type=jnp.float32)

    # Lane-dense (th, 2W*Cout) store.
    o_ref[0] = jnp.maximum(acc + b2_ref[...], 0.0).astype(o_ref.dtype)


def _decoder_kernel_one(u_ref, x_ref, w1_ref, b1_ref, o_ref, *, th):
    # H zero pad comes solely from the zero rows of u here (halo = 1).
    xh = jnp.dot(u_ref[0], x_ref[0],
                 preferred_element_type=jnp.float32).astype(w1_ref.dtype)
    lhs = jnp.concatenate([xh[0:th], xh[1:th + 1], xh[2:th + 2]], axis=-1)
    acc = jnp.dot(lhs, w1_ref[...], preferred_element_type=jnp.float32)
    o_ref[0] = jnp.maximum(acc + b1_ref[...], 0.0).astype(o_ref.dtype)


# ----------------------------------------------------------------------------
# Wrapper-side (plain JAX) weight / spec preparation
# ----------------------------------------------------------------------------
def _up_mat(n):
    """(2n, n) matrix of 2x bilinear upsample (align_corners=False): out = M @ in."""
    v = jnp.arange(2 * n)
    src = v.astype(jnp.float32) / 2.0 - 0.25
    i0 = jnp.floor(src)
    frac = src - i0
    lo = jnp.clip(i0, 0, n - 1).astype(jnp.int32)
    hi = jnp.clip(i0 + 1, 0, n - 1).astype(jnp.int32)
    cols = jnp.arange(n)[None, :]
    m = ((1.0 - frac)[:, None] * (cols == lo[:, None])
         + frac[:, None] * (cols == hi[:, None]))
    return m.astype(jnp.float32)


def _toeplitz_w(w_hwio, wout):
    """(3, 3, Ci, Co) -> (3, wout*Ci, wout*Co) width-Toeplitz ('same', zero pad) weights.

    T[dy, xin*Ci + ci, xout*Co + co] = w[dy, xin - xout + 1, ci, co] if |xin - xout| <= 1
    else 0, so `row @ T[dy]` is the width dimension of a 3x3 conv for kernel row dy with
    width/channel packed on the lane axis (channel fastest).  Edge zero pad is implicit.
    """
    kh, kw, ci, co = w_hwio.shape
    xin = jnp.arange(wout)[:, None]
    xout = jnp.arange(wout)[None, :]
    dx = xin - xout + 1                                       # (wout, wout)
    valid = (dx >= 0) & (dx < kw)
    t = w_hwio[:, jnp.clip(dx, 0, kw - 1)]                    # (kh, wout, wout, ci, co)
    t = jnp.where(valid[None, :, :, None, None], t, 0.0)
    t = jnp.transpose(t, (0, 1, 3, 2, 4))                     # (kh, xin, ci, xout, co)
    return t.reshape(kh, wout * ci, wout * co)


def _row_up_tiles(h, th, halo):
    """(n_tiles, th + 2*halo, h) per-tile H-upsample row matrices.  Rows mapping to
    positions outside the upsampled image are all-zero (= conv zero padding along H)."""
    h_up = 2 * h
    up = jnp.pad(_up_mat(h), ((halo, halo), (0, 0)))
    return jnp.stack([up[t * th: t * th + th + 2 * halo] for t in range(h_up // th)], 0)


def _choose_tile_h(h_up, lanes_f32):
    """Largest output-row tile (multiple of 8, or full 2H) whose f32 intermediates stay
    within a ~160 KiB vreg/VMEM budget.  For small images this is th = 2H (grid (N, 1)):
    grid steps cost ~0.35 us each and a 2-4 step pipeline has no depth anyway, so we do
    NOT force >= 2 H tiles (perf review)."""
    budget = 160 * 1024
    cands = [d for d in range(8, h_up, 8) if h_up % d == 0] + [h_up]
    best = cands[0]
    for d in cands:
        if (d + 4) * lanes_f32 * 4 <= budget:
            best = d
    return best


def _vmem_cap_bytes():
    try:
        return int(pltpu.get_tpu_info().vmem_capacity_bytes)
    except Exception:
        return 64 * 1024 * 1024


def _probe_kernel(x_ref, o_ref):
    o_ref[...] = x_ref[...] + 1.0


@functools.lru_cache(maxsize=None)
def _single_buffering_supported():
    """Probe-compile a tiny kernel using pl.Buffered(1) so we can single-buffer the
    grid-invariant weight operands (perf review) but fall back cleanly if this JAX build
    rejects buffer_count=1."""
    try:
        spec = pl.BlockSpec((8, 128), lambda i: (0, 0), pipeline_mode=pl.Buffered(1))
        fn = pl.pallas_call(
            _probe_kernel,
            out_shape=jax.ShapeDtypeStruct((8, 128), jnp.float32),
            grid=(2,),
            in_specs=[spec],
            out_specs=pl.BlockSpec((8, 128), lambda i: (0, 0)),
        )
        jax.jit(fn).lower(jax.ShapeDtypeStruct((8, 128), jnp.float32)).compile()
        return True
    except Exception:
        return False


def _const_spec(block_shape, index_map):
    """BlockSpec for a grid-invariant operand: single-buffered when supported, since the
    default 2-deep buffering only doubles its VMEM footprint (it is fetched once)."""
    if _single_buffering_supported():
        return pl.BlockSpec(block_shape, index_map, pipeline_mode=pl.Buffered(1))
    return pl.BlockSpec(block_shape, index_map)


# ----------------------------------------------------------------------------
# DecoderBlock forward (is_deconv=False), packed-layout primary API.
# ----------------------------------------------------------------------------
def decoder_block_forward_packed(x_packed, params, *, width, one_conv=False,
                                 mxu_dtype=jnp.bfloat16, tile_h=None,
                                 out_dtype=jnp.float32):
    """x_packed: (N, H, W*Cin) f32, lane axis = width*channel (channel fastest).
    Returns (N, 2H, 2W*Cout) in the same packed layout so DecoderBlocks chain without any
    NCHW relayout passes.  `out_dtype=jnp.bfloat16` halves the HBM writeback if the
    consumer tolerates it (v5e note in the perf review)."""
    pw1, pb1 = params["w1"], params["b1"]
    cin, cm = pw1.shape[2], pw1.shape[3]
    n, h, wc = x_packed.shape
    w = width
    assert wc == w * cin, (wc, w, cin)
    h_up, w_up = 2 * h, 2 * w
    n1 = w_up * cm

    # Lane/K-pad W*Cin up to one full 128-lane vreg when it is narrower (review #7).
    k1 = w * cin
    k1p = 128 if k1 < 128 else k1

    # conv1 weights: fuse the bilinear W-upsample, zero-pad K, dy-stack along K.
    uw = jnp.kron(_up_mat(w).T, jnp.eye(cin, dtype=jnp.float32))      # (W*Cin, 2W*Cin)
    w1f = jnp.einsum("ab,dbc->dac", uw, _toeplitz_w(pw1, w_up),
                     precision=jax.lax.Precision.HIGHEST)             # (3, W*Cin, 2W*Cmid)
    w1f = jnp.pad(w1f, ((0, 0), (0, k1p - k1), (0, 0)))
    w1f = w1f.reshape(3 * k1p, n1).astype(mxu_dtype)                  # dy-stacked K
    b1t = jnp.tile(pb1, w_up).reshape(1, n1).astype(jnp.float32)

    if one_conv:
        n_out, halo = n1, 1
    else:
        pw2, pb2 = params["w2"], params["b2"]
        cout = pw2.shape[3]
        n_out, halo = w_up * cout, 2
        w2f = _toeplitz_w(pw2, w_up).astype(mxu_dtype)                # (3, 2W*Cmid, 2W*Cout)
        b2t = jnp.tile(pb2, w_up).reshape(1, n_out).astype(jnp.float32)

    th = tile_h if tile_h is not None else _choose_tile_h(h_up, max(n1, n_out))
    assert h_up % th == 0, (h_up, th)
    n_tiles = h_up // th
    u_all = _row_up_tiles(h, th, halo).astype(mxu_dtype)              # (n_tiles, th+2*halo, H)

    x2 = jnp.pad(x_packed, ((0, 0), (0, 0), (0, k1p - k1))).astype(mxu_dtype)

    # Grid-varying operands keep default double-buffering (x changes every step when
    # n_tiles == 1); grid-invariant weights/biases are single-buffered.
    in_specs = [
        pl.BlockSpec((1, th + 2 * halo, h), lambda i, t: (t, 0, 0)),
        pl.BlockSpec((1, h, k1p), lambda i, t: (i, 0, 0)),
        _const_spec((3 * k1p, n1), lambda i, t: (0, 0)),
        _const_spec((1, n1), lambda i, t: (0, 0)),
    ]
    if one_conv:
        kernel = functools.partial(_decoder_kernel_one, th=th)
        args = (u_all, x2, w1f, b1t)
    else:
        in_specs = in_specs + [
            _const_spec((3, n1, n_out), lambda i, t: (0, 0, 0)),
            _const_spec((1, n_out), lambda i, t: (0, 0)),
        ]
        kernel = functools.partial(_decoder_kernel_two, th=th, h_up=h_up)
        args = (u_all, x2, w1f, b1t, w2f, b2t)

    # vmem limit computed from the actual block sizes (+ f32 intermediates headroom).
    itm = jnp.dtype(mxu_dtype).itemsize
    blk_bytes = (2 * (th + 2 * halo) * h * itm      # u tile (x2 buffers)
                 + 2 * h * k1p * itm                # x tile (x2 buffers)
                 + 3 * k1p * n1 * itm + 4 * n1      # w1f + b1
                 + 2 * th * n_out * jnp.dtype(out_dtype).itemsize)
    if not one_conv:
        blk_bytes += 3 * n1 * n_out * itm + 4 * n_out
    interm_bytes = 4 * ((th + 4) * k1p              # xh
                        + 3 * (th + 2) * k1p        # dy-stacked conv1 LHS
                        + (th + 2) * n1             # h1
                        + th * n_out)               # conv2 accumulator
    vmem_limit = int(min(_vmem_cap_bytes() * 3 // 4,
                         max(32 * 1024 * 1024, 2 * (blk_bytes + interm_bytes))))

    return pl.pallas_call(
        kernel,
        out_shape=jax.ShapeDtypeStruct((n, h_up, n_out), out_dtype),
        grid=(n, n_tiles),
        in_specs=in_specs,
        out_specs=pl.BlockSpec((1, th, n_out), lambda i, t: (i, t, 0)),
        compiler_params=pltpu.CompilerParams(
            dimension_semantics=("parallel", "parallel"),
            vmem_limit_bytes=vmem_limit,
        ),
    )(*args)


# ----------------------------------------------------------------------------
# NCHW-compat wrapper (PyTorch-shaped interface; only for standalone use / tests).
# In a decoder stack, call decoder_block_forward_packed directly and keep the packed
# layout end-to-end: the two relayout passes below are exactly the extra HBM read+write
# passes the perf review flags.
# ----------------------------------------------------------------------------
def pack_nchw(x_nchw):
    n, c, h, w = x_nchw.shape
    return jnp.transpose(x_nchw, (0, 2, 3, 1)).reshape(n, h, w * c)


def unpack_to_nchw(x_packed, c):
    n, h, wc = x_packed.shape
    return x_packed.reshape(n, h, wc // c, c).transpose(0, 3, 1, 2)


def decoder_block_forward(x_nchw, params, one_conv=False, mxu_dtype=jnp.bfloat16,
                          tile_h=None):
    """x_nchw: (N, Cin, H, W) f32.  Returns (N, Cout, 2H, 2W) f32."""
    w = x_nchw.shape[3]
    cout = params["w1"].shape[3] if one_conv else params["w2"].shape[3]
    y = decoder_block_forward_packed(pack_nchw(x_nchw), params, width=w,
                                     one_conv=one_conv, mxu_dtype=mxu_dtype,
                                     tile_h=tile_h)
    return unpack_to_nchw(y, cout)


# ----------------------------------------------------------------------------
# Reference (plain JAX / XLA) for verification.
# ----------------------------------------------------------------------------
def upsample_bilinear_2x(x_nhwc):
    def up_axis(a, axis):
        nn = a.shape[axis]
        prev = jnp.concatenate([lax.slice_in_dim(a, 0, 1, axis=axis),
                                lax.slice_in_dim(a, 0, nn - 1, axis=axis)], axis=axis)
        nxt = jnp.concatenate([lax.slice_in_dim(a, 1, nn, axis=axis),
                               lax.slice_in_dim(a, nn - 1, nn, axis=axis)], axis=axis)
        even = 0.25 * prev + 0.75 * a
        odd = 0.75 * a + 0.25 * nxt
        stacked = jnp.stack([even, odd], axis=axis + 1)
        new_shape = list(a.shape)
        new_shape[axis] = 2 * nn
        return stacked.reshape(new_shape)

    x = up_axis(x_nhwc, 1)  # H
    x = up_axis(x, 2)       # W
    return x


def decoder_block_reference(x_nchw, params, one_conv=False):
    x = jnp.transpose(x_nchw, (0, 2, 3, 1))
    x = upsample_bilinear_2x(x)

    def conv_relu(a, w_, b):
        y = lax.conv_general_dilated(a, w_, (1, 1), "SAME",
                                     dimension_numbers=("NHWC", "HWIO", "NHWC"),
                                     precision=jax.lax.Precision.HIGHEST)
        return jnp.maximum(y + b, 0.0)

    x = conv_relu(x, params["w1"], params["b1"])
    if not one_conv:
        x = conv_relu(x, params["w2"], params["b2"])
    return jnp.transpose(x, (0, 3, 1, 2))


def init_params(key, in_channels, middle_channels, out_channels):
    k1, k2, k3, k4 = jax.random.split(key, 4)
    s1 = (3.0 * 3.0 * in_channels) ** -0.5
    s2 = (3.0 * 3.0 * middle_channels) ** -0.5
    return {
        # HWIO layout (3, 3, Cin, Cout)
        "w1": jax.random.uniform(k1, (3, 3, in_channels, middle_channels),
                                 jnp.float32, -s1, s1),
        "b1": jax.random.uniform(k2, (middle_channels,), jnp.float32, -s1, s1),
        "w2": jax.random.uniform(k3, (3, 3, middle_channels, out_channels),
                                 jnp.float32, -s2, s2),
        "b2": jax.random.uniform(k4, (out_channels,), jnp.float32, -s2, s2),
    }


if __name__ == "__main__":
    # DecoderBlock(in_channels=4, middle_channels=8, out_channels=4)
    N, Cin, Cmid, Cout, H, W = 2, 4, 8, 4, 16, 16

    key = jax.random.PRNGKey(0)
    kx, kp = jax.random.split(key)
    x = jax.random.normal(kx, (N, Cin, H, W), jnp.float32)   # NCHW, like PyTorch
    params = init_params(kp, Cin, Cmid, Cout)

    fwd = jax.jit(decoder_block_forward,
                  static_argnames=("one_conv", "mxu_dtype", "tile_h"))

    ref2 = jax.block_until_ready(decoder_block_reference(x, params))
    ref1 = jax.block_until_ready(decoder_block_reference(x, params, one_conv=True))

    def check(out, ref, tol_abs, tol_rel, name):
        err = float(jnp.max(jnp.abs(out - ref)))
        scale = float(jnp.max(jnp.abs(ref)))
        tol = tol_abs + tol_rel * scale
        assert err <= tol, f"{name}: max|err|={err} > tol={tol} (max|ref|={scale})"

    # 1) Default production path (bf16 MXU operands, f32 accumulation).
    out_bf = jax.block_until_ready(fwd(x, params))
    assert out_bf.shape == (N, Cout, 2 * H, 2 * W), out_bf.shape
    check(out_bf, ref2, 3e-2, 5e-2, "bf16 path")

    # 2) f32-operand path: tighter structural validation (review correctness note).
    out_f32 = jax.block_until_ready(fwd(x, params, mxu_dtype=jnp.float32))
    check(out_f32, ref2, 1e-2, 1e-2, "f32 path")

    # 3) Multi-tile halo handling (top/bottom tiles exercise the gy mask + zero u rows).
    out_mt = jax.block_until_ready(fwd(x, params, mxu_dtype=jnp.float32, tile_h=8))
    check(out_mt, ref2, 1e-2, 1e-2, "multi-tile f32 path")

    # 4) one_conv path (H zero pad comes solely from the zero rows of the u matrix).
    out_1c = jax.block_until_ready(fwd(x, params, one_conv=True, mxu_dtype=jnp.float32))
    assert out_1c.shape == (N, Cmid, 2 * H, 2 * W), out_1c.shape
    check(out_1c, ref1, 1e-2, 1e-2, "one_conv f32 path")

    print("KERNEL_OK")
</pallas_src>

<mosaic_0001>
module attributes {stable_mosaic.version = 11 : i64} {
  func.func @_decoder_kernel_two(%arg0: i32, %arg1: i32, %arg2: memref<1x36x16xbf16, #tpu.memory_space<vmem>>, %arg3: memref<1x16x128xbf16, #tpu.memory_space<vmem>>, %arg4: memref<384x256xbf16, #tpu.memory_space<vmem>>, %arg5: memref<1x256xf32, #tpu.memory_space<vmem>>, %arg6: memref<3x256x128xbf16, #tpu.memory_space<vmem>>, %arg7: memref<1x128xf32, #tpu.memory_space<vmem>>, %arg8: memref<1x32x128xf32, #tpu.memory_space<vmem>>) attributes {dimension_semantics = [#tpu.dimension_semantics<parallel>, #tpu.dimension_semantics<parallel>], iteration_bounds = array<i64: 2, 1>, scalar_prefetch = 0 : i64, scratch_operands = 0 : i64, tpu.core_type = #tpu.core_type<tc>, window_params = [{transform_indices = @transform_0, window_bounds = array<i64: 1, 36, 16>}, {transform_indices = @transform_1, window_bounds = array<i64: 1, 16, 128>}, {pipeline_mode = #tpu.pipeline_mode<synchronous>, transform_indices = @transform_2, window_bounds = array<i64: 384, 256>}, {pipeline_mode = #tpu.pipeline_mode<synchronous>, transform_indices = @transform_3, window_bounds = array<i64: 1, 256>}, {pipeline_mode = #tpu.pipeline_mode<synchronous>, transform_indices = @transform_4, window_bounds = array<i64: 3, 256, 128>}, {pipeline_mode = #tpu.pipeline_mode<synchronous>, transform_indices = @transform_5, window_bounds = array<i64: 1, 128>}, {transform_indices = @transform_6, window_bounds = array<i64: 1, 32, 128>}]} {
    %c0 = arith.constant 0 : index
    %c0_0 = arith.constant 0 : index
    %c0_1 = arith.constant 0 : index
    %0 = vector.load %arg2[%c0, %c0_0, %c0_1] : memref<1x36x16xbf16, #tpu.memory_space<vmem>>, vector<1x36x16xbf16>
    %1 = vector.shape_cast %0 : vector<1x36x16xbf16> to vector<36x16xbf16>
    %c0_2 = arith.constant 0 : index
    %c0_3 = arith.constant 0 : index
    %c0_4 = arith.constant 0 : index
    %2 = vector.load %arg3[%c0_2, %c0_3, %c0_4] : memref<1x16x128xbf16, #tpu.memory_space<vmem>>, vector<1x16x128xbf16>
    %3 = vector.shape_cast %2 : vector<1x16x128xbf16> to vector<16x128xbf16>
    %cst = arith.constant dense<0.000000e+00> : vector<36x128xf32>
    %4 = tpu.matmul %1, %3, %cst {dimension_numbers = #tpu.dot_dimension_numbers<[1], [0], [0], [1], [0, 0, 1, 1], [], []>} : vector<36x16xbf16>, vector<16x128xbf16>, vector<36x128xf32> -> vector<36x128xf32>
    %5 = arith.truncf %4 : vector<36x128xf32> to vector<36x128xbf16>
    %6 = vector.extract_strided_slice %5 {offsets = [0, 0], sizes = [34, 128], strides = [1, 1]} : vector<36x128xbf16> to vector<34x128xbf16>
    %7 = vector.extract_strided_slice %5 {offsets = [1, 0], sizes = [34, 128], strides = [1, 1]} : vector<36x128xbf16> to vector<34x128xbf16>
    %8 = vector.extract_strided_slice %5 {offsets = [2, 0], sizes = [34, 128], strides = [1, 1]} : vector<36x128xbf16> to vector<34x128xbf16>
    %9 = tpu.concatenate %6, %7, %8 in 1 : vector<34x128xbf16>, vector<34x128xbf16>, vector<34x128xbf16> -> vector<34x384xbf16>
    %c0_5 = arith.constant 0 : index
    %c0_6 = arith.constant 0 : index
    %10 = vector.load %arg4[%c0_5, %c0_6] : memref<384x256xbf16, #tpu.memory_space<vmem>>, vector<384x256xbf16>
    %cst_7 = arith.constant dense<0.000000e+00> : vector<34x256xf32>
    %11 = tpu.matmul %9, %10, %cst_7 {dimension_numbers = #tpu.dot_dimension_numbers<[1], [0], [0], [1], [0, 0, 1, 1], [], []>} : vector<34x384xbf16>, vector<384x256xbf16>, vector<34x256xf32> -> vector<34x256xf32>
    %c0_8 = arith.constant 0 : index
    %c0_9 = arith.constant 0 : index
    %12 = vector.load %arg5[%c0_8, %c0_9] : memref<1x256xf32, #tpu.memory_space<vmem>>, vector<1x256xf32>
    %13 = vector.broadcast %12 : vector<1x256xf32> to vector<34x256xf32>
    %14 = arith.addf %11, %13 : vector<34x256xf32>
    %cst_10 = arith.constant 0.000000e+00 : f32
    %15 = vector.broadcast %cst_10 : f32 to vector<34x256xf32>
    %16 = arith.maximumf %14, %15 : vector<34x256xf32>
    %c32_i32 = arith.constant 32 : i32
    %17 = arith.muli %arg1, %c32_i32 : i32
    %c1_i32 = arith.constant 1 : i32
    %18 = arith.subi %17, %c1_i32 : i32
    %19 = tpu.iota {dimensions = array<i32: 0>} : vector<34x1xi32>
    %20 = vector.broadcast %18 : i32 to vector<34x1xi32>
    %21 = arith.addi %20, %19 : vector<34x1xi32>
    %c0_i32 = arith.constant 0 : i32
    %22 = vector.broadcast %c0_i32 : i32 to vector<34x1xi32>
    %23 = arith.cmpi sge, %21, %22 : vector<34x1xi32>
    %c32_i32_11 = arith.constant 32 : i32
    %24 = vector.broadcast %c32_i32_11 : i32 to vector<34x1xi32>
    %25 = arith.cmpi slt, %21, %24 : vector<34x1xi32>
    %26 = arith.andi %23, %25 : vector<34x1xi1>
    %cst_12 = arith.constant 0.000000e+00 : f32
    %27 = vector.shape_cast %26 : vector<34x1xi1> to vector<34x1xi1>
    %28 = vector.broadcast %27 : vector<34x1xi1> to vector<34x256xi1>
    %29 = vector.broadcast %cst_12 : f32 to vector<34x256xf32>
    %30 = arith.select %28, %16, %29 : vector<34x256xi1>, vector<34x256xf32>
    %31 = arith.truncf %30 : vector<34x256xf32> to vector<34x256xbf16>
    %32 = vector.extract_strided_slice %31 {offsets = [0, 0], sizes = [32, 256], strides = [1, 1]} : vector<34x256xbf16> to vector<32x256xbf16>
    %c0_13 = arith.constant 0 : index
    %c0_14 = arith.constant 0 : index
    %c0_15 = arith.constant 0 : index
    %33 = vector.load %arg6[%c0_13, %c0_14, %c0_15] : memref<3x256x128xbf16, #tpu.memory_space<vmem>>, vector<1x256x128xbf16>
    %34 = vector.shape_cast %33 : vector<1x256x128xbf16> to vector<256x128xbf16>
    %cst_16 = arith.constant dense<0.000000e+00> : vector<32x128xf32>
    %35 = tpu.matmul %32, %34, %cst_16 {dimension_numbers = #tpu.dot_dimension_numbers<[1], [0], [0], [1], [0, 0, 1, 1], [], []>} : vector<32x256xbf16>, vector<256x128xbf16>, vector<32x128xf32> -> vector<32x128xf32>
    %36 = vector.extract_strided_slice %31 {offsets = [1, 0], sizes = [32, 256], strides = [1, 1]} : vector<34x256xbf16> to vector<32x256xbf16>
    %c1 = arith.constant 1 : index
    %c0_17 = arith.constant 0 : index
    %c0_18 = arith.constant 0 : index
    %37 = vector.load %arg6[%c1, %c0_17, %c0_18] : memref<3x256x128xbf16, #tpu.memory_space<vmem>>, vector<1x256x128xbf16>
    %38 = vector.shape_cast %37 : vector<1x256x128xbf16> to vector<256x128xbf16>
    %cst_19 = arith.constant dense<0.000000e+00> : vector<32x128xf32>
    %39 = tpu.matmul %36, %38, %cst_19 {dimension_numbers = #tpu.dot_dimension_numbers<[1], [0], [0], [1], [0, 0, 1, 1], [], []>} : vector<32x256xbf16>, vector<256x128xbf16>, vector<32x128xf32> -> vector<32x128xf32>
    %40 = arith.addf %35, %39 : vector<32x128xf32>
    %41 = vector.extract_strided_slice %31 {offsets = [2, 0], sizes = [32, 256], strides = [1, 1]} : vector<34x256xbf16> to vector<32x256xbf16>
    %c2 = arith.constant 2 : index
    %c0_20 = arith.constant 0 : index
    %c0_21 = arith.constant 0 : index
    %42 = vector.load %arg6[%c2, %c0_20, %c0_21] : memref<3x256x128xbf16, #tpu.memory_space<vmem>>, vector<1x256x128xbf16>
    %43 = vector.shape_cast %42 : vector<1x256x128xbf16> to vector<256x128xbf16>
    %cst_22 = arith.constant dense<0.000000e+00> : vector<32x128xf32>
    %44 = tpu.matmul %41, %43, %cst_22 {dimension_numbers = #tpu.dot_dimension_numbers<[1], [0], [0], [1], [0, 0, 1, 1], [], []>} : vector<32x256xbf16>, vector<256x128xbf16>, vector<32x128xf32> -> vector<32x128xf32>
    %45 = arith.addf %40, %44 : vector<32x128xf32>
    %c0_23 = arith.constant 0 : index
    %c0_24 = arith.constant 0 : index
    %46 = vector.load %arg7[%c0_23, %c0_24] : memref<1x128xf32, #tpu.memory_space<vmem>>, vector<1x128xf32>
    %47 = vector.broadcast %46 : vector<1x128xf32> to vector<32x128xf32>
    %48 = arith.addf %45, %47 : vector<32x128xf32>
    %cst_25 = arith.constant 0.000000e+00 : f32
    %49 = vector.broadcast %cst_25 : f32 to vector<32x128xf32>
    %50 = arith.maximumf %48, %49 : vector<32x128xf32>
    %c0_26 = arith.constant 0 : index
    %c0_27 = arith.constant 0 : index
    %c0_28 = arith.constant 0 : index
    %51 = vector.load %arg8[%c0_26, %c0_27, %c0_28] : memref<1x32x128xf32, #tpu.memory_space<vmem>>, vector<1x32x128xf32>
    %52 = vector.shape_cast %51 : vector<1x32x128xf32> to vector<32x128xf32>
    %53 = vector.shape_cast %50 : vector<32x128xf32> to vector<1x32x128xf32>
    tpu.vector_store %arg8[%c0_26, %c0_27, %c0_28], %53 {strides = array<i32>} : memref<1x32x128xf32, #tpu.memory_space<vmem>>, vector<1x32x128xf32>,
    return
  }
  func.func @transform_0(%arg0: i32, %arg1: i32) -> (i32, i32, i32) {
    %c0_i32 = arith.constant 0 : i32
    %c0_i32_0 = arith.constant 0 : i32
    %c0_i32_1 = arith.constant 0 : i32
    return %arg1, %c0_i32, %c0_i32_0 : i32, i32, i32
  }
  func.func @transform_1(%arg0: i32, %arg1: i32) -> (i32, i32, i32) {
    %c0_i32 = arith.constant 0 : i32
    %c0_i32_0 = arith.constant 0 : i32
    %c0_i32_1 = arith.constant 0 : i32
    return %arg0, %c0_i32, %c0_i32_0 : i32, i32, i32
  }
  func.func @transform_2(%arg0: i32, %arg1: i32) -> (i32, i32) {
    %c0_i32 = arith.constant 0 : i32
    %c0_i32_0 = arith.constant 0 : i32
    %c0_i32_1 = arith.constant 0 : i32
    return %c0_i32, %c0_i32_0 : i32, i32
  }
  func.func @transform_3(%arg0: i32, %arg1: i32) -> (i32, i32) {
    %c0_i32 = arith.constant 0 : i32
    %c0_i32_0 = arith.constant 0 : i32
    %c0_i32_1 = arith.constant 0 : i32
    return %c0_i32, %c0_i32_0 : i32, i32
  }
  func.func @transform_4(%arg0: i32, %arg1: i32) -> (i32, i32, i32) {
    %c0_i32 = arith.constant 0 : i32
    %c0_i32_0 = arith.constant 0 : i32
    %c0_i32_1 = arith.constant 0 : i32
    %c0_i32_2 = arith.constant 0 : i32
    return %c0_i32, %c0_i32_0, %c0_i32_1 : i32, i32, i32
  }
  func.func @transform_5(%arg0: i32, %arg1: i32) -> (i32, i32) {
    %c0_i32 = arith.constant 0 : i32
    %c0_i32_0 = arith.constant 0 : i32
    %c0_i32_1 = arith.constant 0 : i32
    return %c0_i32, %c0_i32_0 : i32, i32
  }
  func.func @transform_6(%arg0: i32, %arg1: i32) -> (i32, i32, i32) {
    %c0_i32 = arith.constant 0 : i32
    %c0_i32_0 = arith.constant 0 : i32
    return %arg0, %arg1, %c0_i32 : i32, i32, i32
  }
}

</mosaic_0001>

<llo_original>
// kernel: tile.13
$region0: #{tile.13}
  #allocation0 [shape = 's32[1]{0}', space=sflag, size = 0x4, scoped, tag = 'scoped memory for tile.13']
  %s0 = inlined_call_operand.vmem [shape: f32[8], index: 0, kind: input, shape index: {}]
  %s1 = inlined_call_operand.vmem [shape: f32[32,8], index: 1, kind: output, shape index: {}]
  // Predicated region
  $region2: #{tile.13} parent=0 // pred_check
    _
  $region3: #{tile.13} parent=0 // pred_check_branch
    %3 = sbr.rel (0) target = $region5
  $region4: #{tile.13} parent=0 // pred_region
    _
  $region5: #{tile.13} parent=0 // pred_fallthru
    _
  %v4 = vld [vmem:[%s0] ss:$0 sm:$0xff]
  %5 = vst [vmem:[%s1] sm:$0xff] %v4
  %s6 = scalar_lea.vmem %s1, 8
  %7 = vst [vmem:[%s6] sm:$0xff] %v4
  %s8 = scalar_lea.vmem %s1, 16
  %9 = vst [vmem:[%s8] sm:$0xff] %v4
  %s10 = scalar_lea.vmem %s1, 24
  %11 = vst [vmem:[%s10] sm:$0xff] %v4

// kernel: tile.14
$region0: #{tile.14}
  %s0 = inlined_call_operand.vmem [shape: f32[32,8], index: 0, kind: input, shape index: {}]
  %s1 = inlined_call_operand.vmem [shape: f32[1,256], index: 1, kind: output, shape index: {}]
  $region1: #{tile.14} parent=0
    #allocation0 [shape = 'u8[8192]{0}', space=vmem, size = 0x2000, scoped, tag = 'scoped mem for output reshape']
    %s2 = smov 3
    %v3 = vld [vmem:[%s0] ss:$16 sm:%s2]
    %vm4 = vcmask 64512
    %5 = vst.msk [vmem:[#allocation0] ss:$8 sm:$0x3] %vm4, %v3
    %s6 = scalar_lea.vmem %s0, 15
    %s7 = smov 3
    %v8 = vld [vmem:[%s6] ss:$16 sm:%s7]
    %9 = vrot.lane.b32.xlu0 %v8, 120
    %v10 = vpop.permute.xlu0 %9
    %vm11 = vcmask 1048512
    %12 = vst.msk [vmem:[#allocation0] ss:$8 sm:$0x3] %vm11, %v10
    %s13 = scalar_lea.vmem %s0, 14
    %s14 = smov 3
    %v15 = vld [vmem:[%s13] ss:$16 sm:%s14]
    %16 = vrot.lane.b32.xlu0 %v15, 112
    %v17 = vpop.permute.xlu0 %16
    %vm18 = vcmask 982912
    %19 = vst.msk [vmem:[#allocation0] ss:$8 sm:$0x3] %vm18, %v17
    %s20 = scalar_lea.vmem %s0, 13
    %s21 = smov 3
    %v22 = vld [vmem:[%s20] ss:$16 sm:%s21]
    %23 = vrot.lane.b32.xlu0 %v22, 104
    %v24 = vpop.permute.xlu0 %23
    %vm25 = vcmask 917312
    %26 = vst.msk [vmem:[#allocation0] ss:$8 sm:$0x3] %vm25, %v24
    %s27 = scalar_lea.vmem %s0, 12
    %s28 = smov 3
    %v29 = vld [vmem:[%s27] ss:$16 sm:%s28]
    %30 = vrot.lane.b32.xlu0 %v29, 96
    %v31 = vpop.permute.xlu0 %30
    %vm32 = vcmask 851712
    %33 = vst.msk [vmem:[#allocation0] ss:$8 sm:$0x3] %vm32, %v31
    %s34 = scalar_lea.vmem %s0, 11
    %s35 = smov 3
    %v36 = vld [vmem:[%s34] ss:$16 sm:%s35]
    %37 = vrot.lane.b32.xlu0 %v36, 88
    %v38 = vpop.permute.xlu0 %37
    %vm39 = vcmask 786112
    %40 = vst.msk [vmem:[#allocation0] ss:$8 sm:$0x3] %vm39, %v38
    %s41 = scalar_lea.vmem %s0, 10
    %s42 = smov 3
    %v43 = vld [vmem:[%s41] ss:$16 sm:%s42]
    %44 = vrot.lane.b32.xlu0 %v43, 80
    %v45 = vpop.permute.xlu0 %44
    %vm46 = vcmask 720512
    %47 = vst.msk [vmem:[#allocation0] ss:$8 sm:$0x3] %vm46, %v45
    %s48 = scalar_lea.vmem %s0, 9
    %s49 = smov 3
    %v50 = vld [vmem:[%s48] ss:$16 sm:%s49]
    %51 = vrot.lane.b32.xlu0 %v50, 72
    %v52 = vpop.permute.xlu0 %51
    %vm53 = vcmask 654912
    %54 = vst.msk [vmem:[#allocation0] ss:$8 sm:$0x3] %vm53, %v52
    %s55 = scalar_lea.vmem %s0, 8
    %s56 = smov 3
    %v57 = vld [vmem:[%s55] ss:$16 sm:%s56]
    %58 = vrot.lane.b32.xlu0 %v57, 64
    %v59 = vpop.permute.xlu0 %58
    %vm60 = vcmask 589312
    %61 = vst.msk [vmem:[#allocation0] ss:$8 sm:$0x3] %vm60, %v59
    %s62 = scalar_lea.vmem %s0, 7
    %s63 = smov 3
    %v64 = vld [vmem:[%s62] ss:$16 sm:%s63]
    %65 = vrot.lane.b32.xlu0 %v64, 56
    %v66 = vpop.permute.xlu0 %65
    %vm67 = vcmask 523712
    %68 = vst.msk [vmem:[#allocation0] ss:$8 sm:$0x3] %vm67, %v66
    %s69 = scalar_lea.vmem %s0, 6
    %s70 = smov 3
    %v71 = vld [vmem:[%s69] ss:$16 sm:%s70]
    %72 = vrot.lane.b32.xlu0 %v71, 48
    %v73 = vpop.permute.xlu0 %72
    %vm74 = vcmask 458112
    %75 = vst.msk [vmem:[#allocation0] ss:$8 sm:$0x3] %vm74, %v73
    %s76 = scalar_lea.vmem %s0, 5
    %s77 = smov 3
    %v78 = vld [vmem:[%s76] ss:$16 sm:%s77]
    %79 = vrot.lane.b32.xlu0 %v78, 40
    %v80 = vpop.permute.xlu0 %79
    %vm81 = vcmask 392512
    %82 = vst.msk [vmem:[#allocation0] ss:$8 sm:$0x3] %vm81, %v80
    %s83 = scalar_lea.vmem %s0, 4
    %s84 = smov 3
    %v85 = vld [vmem:[%s83] ss:$16 sm:%s84]
    %86 = vrot.lane.b32.xlu0 %v85, 32
    %v87 = vpop.permute.xlu0 %86
    %vm88 = vcmask 326912
    %89 = vst.msk [vmem:[#allocation0] ss:$8 sm:$0x3] %vm88, %v87
    %s90 = scalar_lea.vmem %s0, 3
    %s91 = smov 3
    %v92 = vld [vmem:[%s90] ss:$16 sm:%s91]
    %93 = vrot.lane.b32.xlu0 %v92, 24
    %v94 = vpop.permute.xlu0 %93
    %vm95 = vcmask 261312
    %96 = vst.msk [vmem:[#allocation0] ss:$8 sm:$0x3] %vm95, %v94
    %s97 = scalar_lea.vmem %s0, 2
    %s98 = smov 3
    %v99 = vld [vmem:[%s97] ss:$16 sm:%s98]
    %100 = vrot.lane.b32.xlu0 %v99, 16
    %v101 = vpop.permute.xlu0 %100
    %vm102 = vcmask 195712
    %103 = vst.msk [vmem:[#allocation0] ss:$8 sm:$0x3] %vm102, %v101
    %s104 = scalar_lea.vmem %s0, 1
    %s105 = smov 3
    %v106 = vld [vmem:[%s104] ss:$16 sm:%s105]
    %107 = vrot.lane.b32.xlu0 %v106, 8
    %v108 = vpop.permute.xlu0 %107
    %vm109 = vcmask 130112
    %110 = vst.msk [vmem:[#allocation0] ss:$8 sm:$0x3] %vm109, %v108
    %s112 = sshll.u32 1, 1
    %s113 = ssub.s32 %s112, 1
    %v115 = vld [vmem:[#allocation0] sm:%s113]
    %s116 = sshll.u32 1, 1
    %s117 = ssub.s32 %s116, 1
    %118 = vst [vmem:[%s1] sm:%s117] %v115
    %s119 = scalar_lea.vmem [#allocation0], 8
    %v120 = vld [vmem:[%s119] sm:%s113]
    %s121 = sshll.u32 1, 1
    %s122 = ssub.s32 %s121, 1
    %s123 = scalar_lea.vmem %s1, 1
    %124 = vst [vmem:[%s123] sm:%s122] %v120

// kernel: tile.18
$region0: #{tile.18}
  #allocation0 [shape = 's32[1]{0}', space=sflag, size = 0x4, scoped, tag = 'scoped memory for tile.18']
  %s0 = inlined_call_operand.vmem [shape: f32[4], index: 0, kind: input, shape index: {}]
  %s1 = inlined_call_operand.vmem [shape: f32[32,4], index: 1, kind: output, shape index: {}]
  // Predicated region
  $region2: #{tile.18} parent=0 // pred_check
    _
  $region3: #{tile.18} parent=0 // pred_check_branch
    %3 = sbr.rel (0) target = $region5
  $region4: #{tile.18} parent=0 // pred_region
    _
  $region5: #{tile.18} parent=0 // pred_fallthru
    _
  %v4 = vld [vmem:[%s0] ss:$0 sm:$0xff]
  %5 = vst [vmem:[%s1] sm:$0xff] %v4
  %s6 = scalar_lea.vmem %s1, 8
  %7 = vst [vmem:[%s6] sm:$0xff] %v4
  %s8 = scalar_lea.vmem %s1, 16
  %9 = vst [vmem:[%s8] sm:$0xff] %v4
  %s10 = scalar_lea.vmem %s1, 24
  %11 = vst [vmem:[%s10] sm:$0xff] %v4

// kernel: tile.19
$region0: #{tile.19}
  %s0 = inlined_call_operand.vmem [shape: f32[32,4], index: 0, kind: input, shape index: {}]
  %s1 = inlined_call_operand.vmem [shape: f32[1,128], index: 1, kind: output, shape index: {}]
  $region1: #{tile.19} parent=0
    #allocation0 [shape = 'u8[4096]{0}', space=vmem, size = 0x1000, scoped, tag = 'scoped mem for output reshape']
    %v2 = vld [vmem:[%s0] sm:$0x1]
    %vm3 = vcmask 31744
    %4 = vst.msk [vmem:[#allocation0] sm:$0x1] %vm3, %v2
    %s5 = scalar_lea.vmem %s0, 31
    %v6 = vld [vmem:[%s5] sm:$0x1]
    %7 = vrot.lane.b32.xlu0 %v6, 124
    %v8 = vpop.permute.xlu0 %7
    %vm9 = vcmask 1048544
    %10 = vst.msk [vmem:[#allocation0] sm:$0x1] %vm9, %v8
    %s11 = scalar_lea.vmem %s0, 30
    %v12 = vld [vmem:[%s11] sm:$0x1]
    %13 = vrot.lane.b32.xlu0 %v12, 120
    %v14 = vpop.permute.xlu0 %13
    %vm15 = vcmask 1015744
    %16 = vst.msk [vmem:[#allocation0] sm:$0x1] %vm15, %v14
    %s17 = scalar_lea.vmem %s0, 29
    %v18 = vld [vmem:[%s17] sm:$0x1]
    %19 = vrot.lane.b32.xlu0 %v18, 116
    %v20 = vpop.permute.xlu0 %19
    %vm21 = vcmask 982944
    %22 = vst.msk [vmem:[#allocation0] sm:$0x1] %vm21, %v20
    %s23 = scalar_lea.vmem %s0, 28
    %v24 = vld [vmem:[%s23] sm:$0x1]
    %25 = vrot.lane.b32.xlu0 %v24, 112
    %v26 = vpop.permute.xlu0 %25
    %vm27 = vcmask 950144
    %28 = vst.msk [vmem:[#allocation0] sm:$0x1] %vm27, %v26
    %s29 = scalar_lea.vmem %s0, 27
    %v30 = vld [vmem:[%s29] sm:$0x1]
    %31 = vrot.lane.b32.xlu0 %v30, 108
    %v32 = vpop.permute.xlu0 %31
    %vm33 = vcmask 917344
    %34 = vst.msk [vmem:[#allocation0] sm:$0x1] %vm33, %v32
    %s35 = scalar_lea.vmem %s0, 26
    %v36 = vld [vmem:[%s35] sm:$0x1]
    %37 = vrot.lane.b32.xlu0 %v36, 104
    %v38 = vpop.permute.xlu0 %37
    %vm39 = vcmask 884544
    %40 = vst.msk [vmem:[#allocation0] sm:$0x1] %vm39, %v38
    %s41 = scalar_lea.vmem %s0, 25
    %v42 = vld [vmem:[%s41] sm:$0x1]
    %43 = vrot.lane.b32.xlu0 %v42, 100
    %v44 = vpop.permute.xlu0 %43
    %vm45 = vcmask 851744
    %46 = vst.msk [vmem:[#allocation0] sm:$0x1] %vm45, %v44
    %s47 = scalar_lea.vmem %s0, 24
    %v48 = vld [vmem:[%s47] sm:$0x1]
    %49 = vrot.lane.b32.xlu0 %v48, 96
    %v50 = vpop.permute.xlu0 %49
    %vm51 = vcmask 818944
    %52 = vst.msk [vmem:[#allocation0] sm:$0x1] %vm51, %v50
    %s53 = scalar_lea.vmem %s0, 23
    %v54 = vld [vmem:[%s53] sm:$0x1]
    %55 = vrot.lane.b32.xlu0 %v54, 92
    %v56 = vpop.permute.xlu0 %55
    %vm57 = vcmask 786144
    %58 = vst.msk [vmem:[#allocation0] sm:$0x1] %vm57, %v56
    %s59 = scalar_lea.vmem %s0, 22
    %v60 = vld [vmem:[%s59] sm:$0x1]
    %61 = vrot.lane.b32.xlu0 %v60, 88
    %v62 = vpop.permute.xlu0 %61
    %vm63 = vcmask 753344
    %64 = vst.msk [vmem:[#allocation0] sm:$0x1] %vm63, %v62
    %s65 = scalar_lea.vmem %s0, 21
    %v66 = vld [vmem:[%s65] sm:$0x1]
    %67 = vrot.lane.b32.xlu0 %v66, 84
    %v68 = vpop.permute.xlu0 %67
    %vm69 = vcmask 720544
    %70 = vst.msk [vmem:[#allocation0] sm:$0x1] %vm69, %v68
    %s71 = scalar_lea.vmem %s0, 20
    %v72 = vld [vmem:[%s71] sm:$0x1]
    %73 = vrot.lane.b32.xlu0 %v72, 80
    %v74 = vpop.permute.xlu0 %73
    %vm75 = vcmask 687744
    %76 = vst.msk [vmem:[#allocation0] sm:$0x1] %vm75, %v74
    %s77 = scalar_lea.vmem %s0, 19
    %v78 = vld [vmem:[%s77] sm:$0x1]
    %79 = vrot.lane.b32.xlu0 %v78, 76
    %v80 = vpop.permute.xlu0 %79
    %vm81 = vcmask 654944
    %82 = vst.msk [vmem:[#allocation0] sm:$0x1] %vm81, %v80
    %s83 = scalar_lea.vmem %s0, 18
    %v84 = vld [vmem:[%s83] sm:$0x1]
    %85 = vrot.lane.b32.xlu0 %v84, 72
    %v86 = vpop.permute.xlu0 %85
    %vm87 = vcmask 622144
    %88 = vst.msk [vmem:[#allocation0] sm:$0x1] %vm87, %v86
    %s89 = scalar_lea.vmem %s0, 17
    %v90 = vld [vmem:[%s89] sm:$0x1]
    %91 = vrot.lane.b32.xlu0 %v90, 68
    %v92 = vpop.permute.xlu0 %91
    %vm93 = vcmask 589344
    %94 = vst.msk [vmem:[#allocation0] sm:$0x1] %vm93, %v92
    %s95 = scalar_lea.vmem %s0, 16
    %v96 = vld [vmem:[%s95] sm:$0x1]
    %97 = vrot.lane.b32.xlu0 %v96, 64
    %v98 = vpop.permute.xlu0 %97
    %vm99 = vcmask 556544
    %100 = vst.msk [vmem:[#allocation0] sm:$0x1] %vm99, %v98
    %s101 = scalar_lea.vmem %s0, 15
    %v102 = vld [vmem:[%s101] sm:$0x1]
    %103 = vrot.lane.b32.xlu0 %v102, 60
    %v104 = vpop.permute.xlu0 %103
    %vm105 = vcmask 523744
    %106 = vst.msk [vmem:[#allocation0] sm:$0x1] %vm105, %v104
    %s107 = scalar_lea.vmem %s0, 14
    %v108 = vld [vmem:[%s107] sm:$0x1]
    %109 = vrot.lane.b32.xlu0 %v108, 56
    %v110 = vpop.permute.xlu0 %109
    %vm111 = vcmask 490944
    %112 = vst.msk [vmem:[#allocation0] sm:$0x1] %vm111, %v110
    %s113 = scalar_lea.vmem %s0, 13
    %v114 = vld [vmem:[%s113] sm:$0x1]
    %115 = vrot.lane.b32.xlu0 %v114, 52
    %v116 = vpop.permute.xlu0 %115
    %vm117 = vcmask 458144
    %118 = vst.msk [vmem:[#allocation0] sm:$0x1] %vm117, %v116
    %s119 = scalar_lea.vmem %s0, 12
    %v120 = vld [vmem:[%s119] sm:$0x1]
    %121 = vrot.lane.b32.xlu0 %v120, 48
    %v122 = vpop.permute.xlu0 %121
    %vm123 = vcmask 425344
    %124 = vst.msk [vmem:[#allocation0] sm:$0x1] %vm123, %v122
    %s125 = scalar_lea.vmem %s0, 11
    %v126 = vld [vmem:[%s125] sm:$0x1]
    %127 = vrot.lane.b32.xlu0 %v126, 44
    %v128 = vpop.permute.xlu0 %127
    %vm129 = vcmask 392544
    %130 = vst.msk [vmem:[#allocation0] sm:$0x1] %vm129, %v128
    %s131 = scalar_lea.vmem %s0, 10
    %v132 = vld [vmem:[%s131] sm:$0x1]
    %133 = vrot.lane.b32.xlu0 %v132, 40
    %v134 = vpop.permute.xlu0 %133
    %vm135 = vcmask 359744
    %136 = vst.msk [vmem:[#allocation0] sm:$0x1] %vm135, %v134
    %s137 = scalar_lea.vmem %s0, 9
    %v138 = vld [vmem:[%s137] sm:$0x1]
    %139 = vrot.lane.b32.xlu0 %v138, 36
    %v140 = vpop.permute.xlu0 %139
    %vm141 = vcmask 326944
    %142 = vst.msk [vmem:[#allocation0] sm:$0x1] %vm141, %v140
    %s143 = scalar_lea.vmem %s0, 8
    %v144 = vld [vmem:[%s143] sm:$0x1]
    %145 = vrot.lane.b32.xlu0 %v144, 32
    %v146 = vpop.permute.xlu0 %145
    %vm147 = vcmask 294144
    %148 = vst.msk [vmem:[#allocation0] sm:$0x1] %vm147, %v146
    %s149 = scalar_lea.vmem %s0, 7
    %v150 = vld [vmem:[%s149] sm:$0x1]
    %151 = vrot.lane.b32.xlu0 %v150, 28
    %v152 = vpop.permute.xlu0 %151
    %vm153 = vcmask 261344
    %154 = vst.msk [vmem:[#allocation0] sm:$0x1] %vm153, %v152
    %s155 = scalar_lea.vmem %s0, 6
    %v156 = vld [vmem:[%s155] sm:$0x1]
    %157 = vrot.lane.b32.xlu0 %v156, 24
    %v158 = vpop.permute.xlu0 %157
    %vm159 = vcmask 228544
    %160 = vst.msk [vmem:[#allocation0] sm:$0x1] %vm159, %v158
    %s161 = scalar_lea.vmem %s0, 5
    %v162 = vld [vmem:[%s161] sm:$0x1]
    %163 = vrot.lane.b32.xlu0 %v162, 20
    %v164 = vpop.permute.xlu0 %163
    %vm165 = vcmask 195744
    %166 = vst.msk [vmem:[#allocation0] sm:$0x1] %vm165, %v164
    %s167 = scalar_lea.vmem %s0, 4
    %v168 = vld [vmem:[%s167] sm:$0x1]
    %169 = vrot.lane.b32.xlu0 %v168, 16
    %v170 = vpop.permute.xlu0 %169
    %vm171 = vcmask 162944
    %172 = vst.msk [vmem:[#allocation0] sm:$0x1] %vm171, %v170
    %s173 = scalar_lea.vmem %s0, 3
    %v174 = vld [vmem:[%s173] sm:$0x1]
    %175 = vrot.lane.b32.xlu0 %v174, 12
    %v176 = vpop.permute.xlu0 %175
    %vm177 = vcmask 130144
    %178 = vst.msk [vmem:[#allocation0] sm:$0x1] %vm177, %v176
    %s179 = scalar_lea.vmem %s0, 2
    %v180 = vld [vmem:[%s179] sm:$0x1]
    %181 = vrot.lane.b32.xlu0 %v180, 8
    %v182 = vpop.permute.xlu0 %181
    %vm183 = vcmask 97344
    %184 = vst.msk [vmem:[#allocation0] sm:$0x1] %vm183, %v182
    %s185 = scalar_lea.vmem %s0, 1
    %v186 = vld [vmem:[%s185] sm:$0x1]
    %187 = vrot.lane.b32.xlu0 %v186, 4
    %v188 = vpop.permute.xlu0 %187
    %vm189 = vcmask 64544
    %190 = vst.msk [vmem:[#allocation0] sm:$0x1] %vm189, %v188
    %s192 = sshll.u32 1, 1
    %s193 = ssub.s32 %s192, 1
    %v195 = vld [vmem:[#allocation0] sm:%s193]
    %s196 = sshll.u32 1, 1
    %s197 = ssub.s32 %s196, 1
    %198 = vst [vmem:[%s1] sm:%s197] %v195

// kernel: decoder_block_forward.1
$region0: #{decoder_block_forward.1}
  #allocation0 [shape = 'u32[]', space=smem, size = 0x4, offset = 0x4, fixed_abs, tag = 'smem constant byte address 0x4 - core index']
  #allocation1 [shape = 'u32[144,128]{1,0:T(1,128)}', space=vmem, size = 0x12000, scoped, tag = 'internal scratch']
  %s0 = inlined_call_operand.vmem [shape: bf16[1,36,16], index: 0, kind: input, shape index: {}]
  %s1 = inlined_call_operand.vmem [shape: bf16[2,16,128], index: 1, kind: input, shape index: {}]
  %s2 = inlined_call_operand.vmem [shape: bf16[384,256], index: 2, kind: input, shape index: {}]
  %s3 = inlined_call_operand.vmem [shape: f32[1,256], index: 3, kind: input, shape index: {}]
  %s4 = inlined_call_operand.vmem [shape: bf16[3,256,128], index: 4, kind: input, shape index: {}]
  %s5 = inlined_call_operand.vmem [shape: f32[1,128], index: 5, kind: input, shape index: {}]
  %s6 = inlined_call_operand.vmem [shape: f32[2,32,128], index: 6, kind: output, shape index: {}]
  %s7 = sld [smem:[#allocation0]]
  $region57: #{decoder_block_forward.1} parent=0
    _
  %s9 = ssub.s32 1, %s7
  %s10 = scalar_select 0, %s9, %s7
  loop: start=0, step=1, limit=4
  $region2: #{decoder_block_forward.1} parent=0 // loop_pre_header
    _
  $region3: #{decoder_block_forward.1} parent=0 // loop_header
    %s12 = sphi 0, %s16
    %p13 = scmp.ge.s32.totalorder %s12, 4
    %s19 = sphi 0, %s31
    %s20 = sphi 0, %s27
    %s21 = sphi 0, %s19
    %s22 = sphi 0, %s20
    %s23 = sphi 0, %s21
    %s24 = sphi 0, %s22
    %s34 = sphi 0, %s36
    %s37 = sphi 0, %s34
    %s38 = sphi 0, %s37
    %s54 = sphi 0, %s38
    %s60 = sphi 0, %s62
    %s63 = sphi 0, %s60
    %s64 = sphi 0, %s63
    %s80 = sphi 0, %s64
    %s84 = sphi 0, %s84
    %s86 = sphi 0, %s84
    %s87 = sphi 0, %s86
    %s101 = sphi 0, %s87
    %s105 = sphi 0, %s105
    %s107 = sphi 0, %s105
    %s108 = sphi 0, %s107
    %s122 = sphi 0, %s108
    %s126 = sphi 0, %s126
    %s128 = sphi 0, %s126
    %s129 = sphi 0, %s128
    %s143 = sphi 0, %s129
    %s147 = sphi 0, %s147
    %s149 = sphi 0, %s147
    %s150 = sphi 0, %s149
    %s164 = sphi 0, %s150
    %s172 = sphi 0, %s174
    %s175 = sphi 0, %s172
    %s176 = sphi 0, %s175
    %s192 = sphi 0, %s176
  $region4: #{decoder_block_forward.1} parent=0 // loop_header_branch
    %15 = sbr.rel (%p13) target = $region8
  $region5: #{decoder_block_forward.1} parent=0 // loop_body
    %s17 = ssub.s32 %s12, 1
    %s18 = ssub.s32 %s12, 2
    %s25 = sadd.s32 1, %s20
    %p26 = scmp.ge.s32.totalorder %s25, 1
    %s27 = scalar_select %p26, 0, %s25
    %s28 = sadd.s32 1, %s19
    %s29 = scalar_select %p26, %s28, %s19
    %p30 = scmp.ge.s32.totalorder %s29, 2
    %s31 = scalar_select %p30, 0, %s29
    %s32 = ssub.s32 %s20, %s27
    %p33 = scmp.eq.s32.totalorder %s32, 0
    %s35 = sadd.s32 %s34, 1
    %s36 = scalar_select %p33, %s34, %s35
    %p39 = pneg %p33
    %p40 = scmp.eq.s32.totalorder %s12, 1
    %p41 = por %p39, %p40
    %p42 = scmp.ne.s32.totalorder %s34, %s37
    %p43 = scmp.eq.s32.totalorder %s12, 0
    %p44 = por %p42, %p43
    %p45 = scmp.ne.s32.totalorder %s34, %s37
    %p46 = scmp.eq.s32.totalorder %s17, 1
    %p47 = por %p45, %p46
    %p48 = scmp.ne.s32.totalorder %s37, %s38
    %p49 = scmp.eq.s32.totalorder %s17, 0
    %p50 = por %p48, %p49
    %p51 = scmp.ne.s32.totalorder %s37, %s38
    %p52 = scmp.eq.s32.totalorder %s18, 1
    %p53 = por %p51, %p52
    %p55 = scmp.ne.s32.totalorder %s38, %s54
    %p56 = scmp.eq.s32.totalorder %s18, 0
    %p57 = por %p55, %p56
    %s58 = ssub.s32 %s19, %s31
    %p59 = scmp.eq.s32.totalorder %s58, 0
    %s61 = sadd.s32 %s60, 1
    %s62 = scalar_select %p59, %s60, %s61
    %p65 = pneg %p59
    %p66 = scmp.eq.s32.totalorder %s12, 1
    %p67 = por %p65, %p66
    %p68 = scmp.ne.s32.totalorder %s60, %s63
    %p69 = scmp.eq.s32.totalorder %s12, 0
    %p70 = por %p68, %p69
    %p71 = scmp.ne.s32.totalorder %s60, %s63
    %p72 = scmp.eq.s32.totalorder %s17, 1
    %p73 = por %p71, %p72
    %p74 = scmp.ne.s32.totalorder %s63, %s64
    %p75 = scmp.eq.s32.totalorder %s17, 0
    %p76 = por %p74, %p75
    %p77 = scmp.ne.s32.totalorder %s63, %s64
    %p78 = scmp.eq.s32.totalorder %s18, 1
    %p79 = por %p77, %p78
    %p81 = scmp.ne.s32.totalorder %s64, %s80
    %p82 = scmp.eq.s32.totalorder %s18, 0
    %p83 = por %p81, %p82
    %s85 = sadd.s32 %s84, 1
    %p88 = scmp.eq.s32.totalorder %s12, 1
    %p89 = scmp.ne.s32.totalorder %s84, %s86
    %p90 = scmp.eq.s32.totalorder %s12, 0
    %p91 = por %p89, %p90
    %p92 = scmp.ne.s32.totalorder %s84, %s86
    %p93 = scmp.eq.s32.totalorder %s17, 1
    %p94 = por %p92, %p93
    %p95 = scmp.ne.s32.totalorder %s86, %s87
    %p96 = scmp.eq.s32.totalorder %s17, 0
    %p97 = por %p95, %p96
    %p98 = scmp.ne.s32.totalorder %s86, %s87
    %p99 = scmp.eq.s32.totalorder %s18, 1
    %p100 = por %p98, %p99
    %p102 = scmp.ne.s32.totalorder %s87, %s101
    %p103 = scmp.eq.s32.totalorder %s18, 0
    %p104 = por %p102, %p103
    %s106 = sadd.s32 %s105, 1
    %p109 = scmp.eq.s32.totalorder %s12, 1
    %p110 = scmp.ne.s32.totalorder %s105, %s107
    %p111 = scmp.eq.s32.totalorder %s12, 0
    %p112 = por %p110, %p111
    %p113 = scmp.ne.s32.totalorder %s105, %s107
    %p114 = scmp.eq.s32.totalorder %s17, 1
    %p115 = por %p113, %p114
    %p116 = scmp.ne.s32.totalorder %s107, %s108
    %p117 = scmp.eq.s32.totalorder %s17, 0
    %p118 = por %p116, %p117
    %p119 = scmp.ne.s32.totalorder %s107, %s108
    %p120 = scmp.eq.s32.totalorder %s18, 1
    %p121 = por %p119, %p120
    %p123 = scmp.ne.s32.totalorder %s108, %s122
    %p124 = scmp.eq.s32.totalorder %s18, 0
    %p125 = por %p123, %p124
    %s127 = sadd.s32 %s126, 1
    %p130 = scmp.eq.s32.totalorder %s12, 1
    %p131 = scmp.ne.s32.totalorder %s126, %s128
    %p132 = scmp.eq.s32.totalorder %s12, 0
    %p133 = por %p131, %p132
    %p134 = scmp.ne.s32.totalorder %s126, %s128
    %p135 = scmp.eq.s32.totalorder %s17, 1
    %p136 = por %p134, %p135
    %p137 = scmp.ne.s32.totalorder %s128, %s129
    %p138 = scmp.eq.s32.totalorder %s17, 0
    %p139 = por %p137, %p138
    %p140 = scmp.ne.s32.totalorder %s128, %s129
    %p141 = scmp.eq.s32.totalorder %s18, 1
    %p142 = por %p140, %p141
    %p144 = scmp.ne.s32.totalorder %s129, %s143
    %p145 = scmp.eq.s32.totalorder %s18, 0
    %p146 = por %p144, %p145
    %s148 = sadd.s32 %s147, 1
    %p151 = scmp.eq.s32.totalorder %s12, 1
    %p152 = scmp.ne.s32.totalorder %s147, %s149
    %p153 = scmp.eq.s32.totalorder %s12, 0
    %p154 = por %p152, %p153
    %p155 = scmp.ne.s32.totalorder %s147, %s149
    %p156 = scmp.eq.s32.totalorder %s17, 1
    %p157 = por %p155, %p156
    %p158 = scmp.ne.s32.totalorder %s149, %s150
    %p159 = scmp.eq.s32.totalorder %s17, 0
    %p160 = por %p158, %p159
    %p161 = scmp.ne.s32.totalorder %s149, %s150
    %p162 = scmp.eq.s32.totalorder %s18, 1
    %p163 = por %p161, %p162
    %p165 = scmp.ne.s32.totalorder %s150, %s164
    %p166 = scmp.eq.s32.totalorder %s18, 0
    %p167 = por %p165, %p166
    %s168 = ssub.s32 %s19, %s31
    %s169 = ssub.s32 %s20, %s27
    %s170 = sor.u32 %s168, %s169
    %p171 = scmp.eq.s32.totalorder %s170, 0
    %s173 = sadd.s32 %s172, 1
    %s174 = scalar_select %p171, %s172, %s173
    %p177 = pneg %p171
    %p178 = scmp.eq.s32.totalorder %s12, 1
    %p179 = por %p177, %p178
    %p180 = scmp.ne.s32.totalorder %s172, %s175
    %p181 = scmp.eq.s32.totalorder %s12, 0
    %p182 = por %p180, %p181
    %p183 = scmp.ne.s32.totalorder %s172, %s175
    %p184 = scmp.eq.s32.totalorder %s17, 1
    %p185 = por %p183, %p184
    %p186 = scmp.ne.s32.totalorder %s175, %s176
    %p187 = scmp.eq.s32.totalorder %s17, 0
    %p188 = por %p186, %p187
    %p189 = scmp.ne.s32.totalorder %s175, %s176
    %p190 = scmp.eq.s32.totalorder %s18, 1
    %p191 = por %p189, %p190
    %p193 = scmp.ne.s32.totalorder %s176, %s192
    %p194 = scmp.eq.s32.totalorder %s18, 0
    %p195 = por %p193, %p194
    %p196 = scmp.le.s32.totalorder 1, %s12
    %p197 = scmp.lt.s32.totalorder %s12, 3
    %p198 = pnand %p196, %p197
    %p199 = pneg %p198
    // Predicated region
    $region9: #{decoder_block_forward.1} parent=5 // pred_check
      _
    $region10: #{decoder_block_forward.1} parent=5 // pred_check_branch
      %201 = sbr.rel (%p198) target = $region12
    $region11: #{decoder_block_forward.1} parent=5 // pred_region
      %s202 = ssub.s32 %s12, 1
      // Predicated region
      $region13: #{decoder_block_forward.1} parent=11 // pred_check
        %p203 = pneg %p50
      $region14: #{decoder_block_forward.1} parent=11 // pred_check_branch
        %205 = sbr.rel (%p203) target = $region16
      $region15: #{decoder_block_forward.1} parent=11 // pred_region
        %p206 = scmp.lt.s32.totalorder %s22, 0
        %s207 = scalar_select %p206, %s22, 0
        %s208 = smul.addr %s207, 5
        %s209 = smul.addr %s208, 4
        %s210 = scalar_lea.vmem %s0, %s209
      $region16: #{decoder_block_forward.1} parent=11 // pred_fallthru
        _
      // Predicated region
      $region17: #{decoder_block_forward.1} parent=11 // pred_check
        %p211 = pneg %p97
      $region18: #{decoder_block_forward.1} parent=11 // pred_check_branch
        %213 = sbr.rel (%p211) target = $region20
      $region19: #{decoder_block_forward.1} parent=11 // pred_region
        _
      $region20: #{decoder_block_forward.1} parent=11 // pred_fallthru
        _
      // Predicated region
      $region21: #{decoder_block_forward.1} parent=11 // pred_check
        %p214 = pneg %p118
      $region22: #{decoder_block_forward.1} parent=11 // pred_check_branch
        %216 = sbr.rel (%p214) target = $region24
      $region23: #{decoder_block_forward.1} parent=11 // pred_region
        _
      $region24: #{decoder_block_forward.1} parent=11 // pred_fallthru
        _
      // Predicated region
      $region25: #{decoder_block_forward.1} parent=11 // pred_check
        %p217 = pneg %p139
      $region26: #{decoder_block_forward.1} parent=11 // pred_check_branch
        %219 = sbr.rel (%p217) target = $region28
      $region27: #{decoder_block_forward.1} parent=11 // pred_region
        _
      $region28: #{decoder_block_forward.1} parent=11 // pred_fallthru
        _
      // Predicated region
      $region29: #{decoder_block_forward.1} parent=11 // pred_check
        %p220 = pneg %p160
      $region30: #{decoder_block_forward.1} parent=11 // pred_check_branch
        %222 = sbr.rel (%p220) target = $region32
      $region31: #{decoder_block_forward.1} parent=11 // pred_region
        _
      $region32: #{decoder_block_forward.1} parent=11 // pred_fallthru
        _
    $region12: #{decoder_block_forward.1} parent=5 // pred_fallthru
      _
    %p223 = scmp.lt.s32.totalorder %s12, 2
    // Predicated region
    $region33: #{decoder_block_forward.1} parent=5 // pred_check
      %p224 = pneg %p223
    $region34: #{decoder_block_forward.1} parent=5 // pred_check_branch
      %226 = sbr.rel (%p224) target = $region36
    $region35: #{decoder_block_forward.1} parent=5 // pred_region
      // Predicated region
      $region37: #{decoder_block_forward.1} parent=35 // pred_check
        %p227 = pneg %p70
      $region38: #{decoder_block_forward.1} parent=35 // pred_check_branch
        %229 = sbr.rel (%p227) target = $region40
      $region39: #{decoder_block_forward.1} parent=35 // pred_region
        %p230 = scmp.lt.s32.totalorder %s19, 1
        %s231 = scalar_select %p230, %s19, 1
        %s232 = smul.addr %s231, 2
        %s233 = smul.addr %s232, 4
        %s234 = scalar_lea.vmem %s1, %s233
      $region40: #{decoder_block_forward.1} parent=35 // pred_fallthru
        _
    $region36: #{decoder_block_forward.1} parent=5 // pred_fallthru
      _
    %p235 = scmp.le.s32.totalorder 1, %s12
    %p236 = scmp.lt.s32.totalorder %s12, 3
    %p237 = pnand %p235, %p236
    %p238 = pneg %p237
    // Predicated region
    $region41: #{decoder_block_forward.1} parent=5 // pred_check
      _
    $region42: #{decoder_block_forward.1} parent=5 // pred_check_branch
      %240 = sbr.rel (%p237) target = $region44
    $region43: #{decoder_block_forward.1} parent=5 // pred_region
      %s241 = ssub.s32 %s12, 1
      %p242 = scmp.lt.s32.totalorder %s22, 0
      %s243 = scalar_select %p242, %s22, 0
      %s244 = smul.addr %s243, 5
      %s245 = smul.addr %s244, 4
      %s246 = scalar_lea.vmem %s0, %s245
      %p247 = pneg %p50
      %p248 = pneg %p47
      %p249 = scmp.lt.s32.totalorder %s21, 1
      %s250 = scalar_select %p249, %s21, 1
      %s251 = smul.addr %s250, 2
      %s252 = smul.addr %s251, 4
      %s253 = scalar_lea.vmem %s1, %s252
      %p254 = pneg %p76
      %p255 = pneg %p73
      %p256 = pneg %p97
      %p257 = pneg %p94
      %p258 = pneg %p118
      %p259 = pneg %p115
      %p260 = pneg %p139
      %p261 = pneg %p136
      %p262 = pneg %p160
      %p263 = pneg %p157
      %p264 = pneg %p188
      %p265 = pneg %p185
      %s266 = smul.u32 4, %s22
      %p267 = scmp.lt.s32.totalorder %s21, 1
      %s268 = scalar_select %p267, %s21, 1
      %p269 = scmp.lt.s32.totalorder %s266, 3
      %s270 = scalar_select %p269, %s266, 3
      %s271 = smul.addr %s268, 4
      %s272 = sadd.s32 %s270, %s271
      %s273 = smul.addr %s272, 8
      %s274 = scalar_lea.vmem %s6, %s273
      %p275 = scmp.lt.s32.totalorder %s22, 0
      %s276 = scalar_select %p275, %s22, 0
      %s277 = smul.addr %s276, 5
      %s278 = smul.addr %s277, 4
      %s279 = scalar_lea.vmem %s0, %s278
      %p280 = scmp.lt.s32.totalorder %s21, 1
      %s281 = scalar_select %p280, %s21, 1
      %s282 = smul.addr %s281, 2
      %s283 = smul.addr %s282, 4
      %s284 = scalar_lea.vmem %s1, %s283
      %s285 = smul.u32 4, %s22
      %p286 = scmp.lt.s32.totalorder %s21, 1
      %s287 = scalar_select %p286, %s21, 1
      %p288 = scmp.lt.s32.totalorder %s285, 3
      %s289 = scalar_select %p288, %s285, 3
      %s290 = smul.addr %s287, 4
      %s291 = sadd.s32 %s289, %s290
      %s292 = smul.addr %s291, 8
      %s293 = scalar_lea.vmem %s6, %s292
      %s294 = smul.u32 4, %s22
      %v296 = vld [vmem:[%s279] sm:$0xf]
      %v297 = vld [vmem:[%s279 + $0x4] sm:$0xf]
      %v298 = vld [vmem:[%s279 + $0x8] sm:$0xf]
      %v299 = vld [vmem:[%s279 + $0xc] sm:$0xf]
      %v300 = vld [vmem:[%s279 + $0x10] sm:$0x3]
      %v301 = vld [vmem:[%s284] sm:$0xf]
      %v302 = vld [vmem:[%s284 + $0x4] sm:$0xf]
      %v308 = vunpack.c.l.b16 %v296
      %v309 = vunpack.c.l.b16 %v297
      %v310 = vunpack.c.l.b16 %v298
      %v311 = vunpack.c.l.b16 %v299
      %v312 = vunpack.c.l.b16 %v300
      %v313 = vpack.c.b16 %v309, %v308
      %v314 = vpack.c.b16 %v311, %v310
      %v315 = vpack.c.b16 %v312, %v312
      %v318 = vunpack.c.l.b16 %v301
      %v319 = vunpack.c.l.b16 %v302
      %v320 = vpack.c.b16 %v319, %v318
      %vm322 = vcmask 130048
      %v324 = vsel %vm322, %v313, 0
      %v327 = vsel %vm322, %v314, 0
      %v330 = vsel %vm322, %v315, 0
      %332 = vmatprep.subr.bf16.mxu0 0
      %333 = vmatpush1.bf16.msra.mxu0 0
      %334 = vmatprep.subr.bf16.mxu0 0
      %335 = vmatpush1.bf16.msra.mxu0 0
      %336 = vmatprep.subr.bf16.mxu0 0
      %337 = vmatpush1.bf16.msra.mxu0 0
      %338 = vmatprep.subr.bf16.mxu0 0
      %339 = vmatpush1.bf16.msra.mxu0 0
      %340 = vmatprep.subr.bf16.mxu0 0
      %341 = vmatpush1.bf16.msra.mxu0 0
      %342 = vmatprep.subr.bf16.mxu0 0
      %343 = vmatpush1.bf16.msra.mxu0 0
      %344 = vmatprep.subr.bf16.mxu0 0
      %345 = vmatpush1.bf16.msra.mxu0 0
      %346 = vmatprep.subr.bf16.mxu0 0
      %347 = vmatpush1.bf16.msra.mxu0 %v320
      %348 = vmatprep.subr.bf16.mxu0 0
      %349 = vmatpush2.bf16.msra.mxu0 0
      %350 = vmatprep.subr.bf16.mxu0 0
      %351 = vmatpush2.bf16.msra.mxu0 0
      %352 = vmatprep.subr.bf16.mxu0 0
      %353 = vmatpush2.bf16.msra.mxu0 0
      %354 = vmatprep.subr.bf16.mxu0 0
      %355 = vmatpush2.bf16.msra.mxu0 0
      %356 = vmatprep.subr.bf16.mxu0 0
      %357 = vmatpush2.bf16.msra.mxu0 0
      %358 = vmatprep.subr.bf16.mxu0 0
      %359 = vmatpush2.bf16.msra.mxu0 0
      %360 = vmatprep.subr.bf16.mxu0 0
      %361 = vmatpush2.bf16.msra.mxu0 0
      %362 = vmatprep.subr.bf16.mxu0 0
      %363 = vmatpush2.bf16.msra.mxu0 0
      %364 = vmatprep.mubr.bf16.mxu0 0
      %365 = vmatmul.mubr.bf16.gmra.mxu0 %v324
      %v366 = vpop.f32.mrf.mxu0
      %v367 = vadd.f32 0.0, %v366
      %v368 = vpop.f32.mrf.mxu0
      %v369 = vpop.f32.mrf.mxu0
      %v370 = vadd.f32 0.0, %v369
      %v371 = vpop.f32.mrf.mxu0
      %372 = vmatprep.mubr.bf16.mxu0 0
      %373 = vmatmul.mubr.bf16.gmra.mxu0 %v327
      %v374 = vpop.f32.mrf.mxu0
      %v375 = vadd.f32 0.0, %v374
      %v376 = vpop.f32.mrf.mxu0
      %v377 = vpop.f32.mrf.mxu0
      %v378 = vadd.f32 0.0, %v377
      %v379 = vpop.f32.mrf.mxu0
      %380 = vmatprep.mubr.bf16.mxu0 0
      %381 = vmatmul.mubr.bf16.gmra.mxu0 %v330
      %v382 = vpop.f32.mrf.mxu0
      %v383 = vadd.f32 0.0, %v382
      %v384 = vpop.f32.mrf.mxu0
      %v385 = vpop.f32.mrf.mxu0
      %v386 = vpop.f32.mrf.mxu0
      %387 = vdwg.mxu0
      %v388 = vpack.c.bf16 %v370, %v367
      %v389 = vpack.c.bf16 %v378, %v375
      %v390 = vpack.c.bf16 %v383, %v383
      %vm391 = vsmask.f32 7424
      %v393 = vshrl.u32 %v388, 16
      %v395 = vshll.u32 %v388, 16
      %v397 = vrot.slane %v395, 1
      %v398 = vor.u32 %v393, %v397
      %v400 = vshll.u32 %v389, 16
      %v402 = vrot.slane %v400, 1
      %v403 = vsel %vm391, %v398, %v402
      %v404 = vshrl.u32 %v389, 16
      %v406 = vor.u32 %v404, %v402
      %v408 = vshll.u32 %v390, 16
      %v410 = vrot.slane %v408, 1
      %v411 = vsel %vm391, %v406, %v410
      %v412 = vshrl.u32 %v390, 16
      %v414 = vor.u32 %v412, %v410
      %vm421 = vcmask 1046528
      %v422 = vrot.slane %v388, 1
      %v423 = vrot.slane %v389, 1
      %v424 = vsel %vm421, %v422, %v423
      %v425 = vrot.slane %v390, 1
      %v426 = vsel %vm421, %v423, %v425
      %v430 = vld [vmem:[%s2] sm:$0xff]
      %v431 = vld [vmem:[%s2 + $0x8] sm:$0xff]
      %v432 = vld [vmem:[%s2 + $0x10] sm:$0xff]
      %v433 = vld [vmem:[%s2 + $0x18] sm:$0xff]
      %v434 = vld [vmem:[%s2 + $0x20] sm:$0xff]
      %v435 = vld [vmem:[%s2 + $0x28] sm:$0xff]
      %v436 = vld [vmem:[%s2 + $0x30] sm:$0xff]
      %v437 = vld [vmem:[%s2 + $0x38] sm:$0xff]
      %v438 = vld [vmem:[%s2 + $0x40] sm:$0xff]
      %v439 = vld [vmem:[%s2 + $0x48] sm:$0xff]
      %v440 = vld [vmem:[%s2 + $0x50] sm:$0xff]
      %v441 = vld [vmem:[%s2 + $0x58] sm:$0xff]
      %v442 = vld [vmem:[%s2 + $0x60] sm:$0xff]
      %v443 = vld [vmem:[%s2 + $0x68] sm:$0xff]
      %v444 = vld [vmem:[%s2 + $0x70] sm:$0xff]
      %v445 = vld [vmem:[%s2 + $0x78] sm:$0xff]
      %v446 = vld [vmem:[%s2 + $0x80] sm:$0xff]
      %v447 = vld [vmem:[%s2 + $0x88] sm:$0xff]
      %v448 = vld [vmem:[%s2 + $0x90] sm:$0xff]
      %v449 = vld [vmem:[%s2 + $0x98] sm:$0xff]
      %v450 = vld [vmem:[%s2 + $0xa0] sm:$0xff]
      %v451 = vld [vmem:[%s2 + $0xa8] sm:$0xff]
      %v452 = vld [vmem:[%s2 + $0xb0] sm:$0xff]
      %v453 = vld [vmem:[%s2 + $0xb8] sm:$0xff]
      %v454 = vld [vmem:[%s2 + $0xc0] sm:$0xff]
      %v455 = vld [vmem:[%s2 + $0xc8] sm:$0xff]
      %v456 = vld [vmem:[%s2 + $0xd0] sm:$0xff]
      %v457 = vld [vmem:[%s2 + $0xd8] sm:$0xff]
      %v458 = vld [vmem:[%s2 + $0xe0] sm:$0xff]
      %v459 = vld [vmem:[%s2 + $0xe8] sm:$0xff]
      %v460 = vld [vmem:[%s2 + $0xf0] sm:$0xff]
      %v461 = vld [vmem:[%s2 + $0xf8] sm:$0xff]
      %v462 = vld [vmem:[%s2 + $0x100] sm:$0xff]
      %v463 = vld [vmem:[%s2 + $0x108] sm:$0xff]
      %v464 = vld [vmem:[%s2 + $0x110] sm:$0xff]
      %v465 = vld [vmem:[%s2 + $0x118] sm:$0xff]
      %v466 = vld [vmem:[%s2 + $0x120] sm:$0xff]
      %v467 = vld [vmem:[%s2 + $0x128] sm:$0xff]
      %v468 = vld [vmem:[%s2 + $0x130] sm:$0xff]
      %v469 = vld [vmem:[%s2 + $0x138] sm:$0xff]
      %v470 = vld [vmem:[%s2 + $0x140] sm:$0xff]
      %v471 = vld [vmem:[%s2 + $0x148] sm:$0xff]
      %v472 = vld [vmem:[%s2 + $0x150] sm:$0xff]
      %v473 = vld [vmem:[%s2 + $0x158] sm:$0xff]
      %v474 = vld [vmem:[%s2 + $0x160] sm:$0xff]
      %v475 = vld [vmem:[%s2 + $0x168] sm:$0xff]
      %v476 = vld [vmem:[%s2 + $0x170] sm:$0xff]
      %v477 = vld [vmem:[%s2 + $0x178] sm:$0xff]
      %v478 = vld [vmem:[%s3] sm:$0x3]
      %v480 = vlaneseq
      %v481 = vshrl.u32 %v480, 7
      %v482 = vsub.s32 0, %v481
      %v483 = vrot.slane %v478, %v482
      %v484 = vlaneseq
      %v485 = vshrl.u32 %v484, 7
      %v486 = vsub.s32 1, %v485
      %v487 = vrot.slane %v478, %v486
      %v538 = vunpack.c.l.b16 %v430
      %v539 = vunpack.c.h.b16 %v430
      %v540 = vunpack.c.l.b16 %v431
      %v541 = vunpack.c.h.b16 %v431
      %v542 = vunpack.c.l.b16 %v432
      %v543 = vunpack.c.h.b16 %v432
      %v544 = vunpack.c.l.b16 %v433
      %v545 = vunpack.c.h.b16 %v433
      %v546 = vunpack.c.l.b16 %v434
      %v547 = vunpack.c.h.b16 %v434
      %v548 = vunpack.c.l.b16 %v435
      %v549 = vunpack.c.h.b16 %v435
      %v550 = vunpack.c.l.b16 %v436
      %v551 = vunpack.c.h.b16 %v436
      %v552 = vunpack.c.l.b16 %v437
      %v553 = vunpack.c.h.b16 %v437
      %v554 = vunpack.c.l.b16 %v438
      %v555 = vunpack.c.h.b16 %v438
      %v556 = vunpack.c.l.b16 %v439
      %v557 = vunpack.c.h.b16 %v439
      %v558 = vunpack.c.l.b16 %v440
      %v559 = vunpack.c.h.b16 %v440
      %v560 = vunpack.c.l.b16 %v441
      %v561 = vunpack.c.h.b16 %v441
      %v562 = vunpack.c.l.b16 %v442
      %v563 = vunpack.c.h.b16 %v442
      %v564 = vunpack.c.l.b16 %v443
      %v565 = vunpack.c.h.b16 %v443
      %v566 = vunpack.c.l.b16 %v444
      %v567 = vunpack.c.h.b16 %v444
      %v568 = vunpack.c.l.b16 %v445
      %v569 = vunpack.c.h.b16 %v445
      %v570 = vunpack.c.l.b16 %v446
      %v571 = vunpack.c.h.b16 %v446
      %v572 = vunpack.c.l.b16 %v447
      %v573 = vunpack.c.h.b16 %v447
      %v574 = vunpack.c.l.b16 %v448
      %v575 = vunpack.c.h.b16 %v448
      %v576 = vunpack.c.l.b16 %v449
      %v577 = vunpack.c.h.b16 %v449
      %v578 = vunpack.c.l.b16 %v450
      %v579 = vunpack.c.h.b16 %v450
      %v580 = vunpack.c.l.b16 %v451
      %v581 = vunpack.c.h.b16 %v451
      %v582 = vunpack.c.l.b16 %v452
      %v583 = vunpack.c.h.b16 %v452
      %v584 = vunpack.c.l.b16 %v453
      %v585 = vunpack.c.h.b16 %v453
      %v586 = vunpack.c.l.b16 %v454
      %v587 = vunpack.c.h.b16 %v454
      %v588 = vunpack.c.l.b16 %v455
      %v589 = vunpack.c.h.b16 %v455
      %v590 = vunpack.c.l.b16 %v456
      %v591 = vunpack.c.h.b16 %v456
      %v592 = vunpack.c.l.b16 %v457
      %v593 = vunpack.c.h.b16 %v457
      %v594 = vunpack.c.l.b16 %v458
      %v595 = vunpack.c.h.b16 %v458
      %v596 = vunpack.c.l.b16 %v459
      %v597 = vunpack.c.h.b16 %v459
      %v598 = vunpack.c.l.b16 %v460
      %v599 = vunpack.c.h.b16 %v460
      %v600 = vunpack.c.l.b16 %v461
      %v601 = vunpack.c.h.b16 %v461
      %v602 = vunpack.c.l.b16 %v462
      %v603 = vunpack.c.h.b16 %v462
      %v604 = vunpack.c.l.b16 %v463
      %v605 = vunpack.c.h.b16 %v463
      %v606 = vunpack.c.l.b16 %v464
      %v607 = vunpack.c.h.b16 %v464
      %v608 = vunpack.c.l.b16 %v465
      %v609 = vunpack.c.h.b16 %v465
      %v610 = vunpack.c.l.b16 %v466
      %v611 = vunpack.c.h.b16 %v466
      %v612 = vunpack.c.l.b16 %v467
      %v613 = vunpack.c.h.b16 %v467
      %v614 = vunpack.c.l.b16 %v468
      %v615 = vunpack.c.h.b16 %v468
      %v616 = vunpack.c.l.b16 %v469
      %v617 = vunpack.c.h.b16 %v469
      %v618 = vunpack.c.l.b16 %v470
      %v619 = vunpack.c.h.b16 %v470
      %v620 = vunpack.c.l.b16 %v471
      %v621 = vunpack.c.h.b16 %v471
      %v622 = vunpack.c.l.b16 %v472
      %v623 = vunpack.c.h.b16 %v472
      %v624 = vunpack.c.l.b16 %v473
      %v625 = vunpack.c.h.b16 %v473
      %v626 = vunpack.c.l.b16 %v474
      %v627 = vunpack.c.h.b16 %v474
      %v628 = vunpack.c.l.b16 %v475
      %v629 = vunpack.c.h.b16 %v475
      %v630 = vunpack.c.l.b16 %v476
      %v631 = vunpack.c.h.b16 %v476
      %v632 = vunpack.c.l.b16 %v477
      %v633 = vunpack.c.h.b16 %v477
      %v634 = vpack.c.b16 %v540, %v538
      %v635 = vpack.c.b16 %v541, %v539
      %v636 = vpack.c.b16 %v544, %v542
      %v637 = vpack.c.b16 %v545, %v543
      %v638 = vpack.c.b16 %v548, %v546
      %v639 = vpack.c.b16 %v549, %v547
      %v640 = vpack.c.b16 %v552, %v550
      %v641 = vpack.c.b16 %v553, %v551
      %v642 = vpack.c.b16 %v556, %v554
      %v643 = vpack.c.b16 %v557, %v555
      %v644 = vpack.c.b16 %v560, %v558
      %v645 = vpack.c.b16 %v561, %v559
      %v646 = vpack.c.b16 %v564, %v562
      %v647 = vpack.c.b16 %v565, %v563
      %v648 = vpack.c.b16 %v568, %v566
      %v649 = vpack.c.b16 %v569, %v567
      %v650 = vpack.c.b16 %v572, %v570
      %v651 = vpack.c.b16 %v573, %v571
      %v652 = vpack.c.b16 %v576, %v574
      %v653 = vpack.c.b16 %v577, %v575
      %v654 = vpack.c.b16 %v580, %v578
      %v655 = vpack.c.b16 %v581, %v579
      %v656 = vpack.c.b16 %v584, %v582
      %v657 = vpack.c.b16 %v585, %v583
      %v658 = vpack.c.b16 %v588, %v586
      %v659 = vpack.c.b16 %v589, %v587
      %v660 = vpack.c.b16 %v592, %v590
      %v661 = vpack.c.b16 %v593, %v591
      %v662 = vpack.c.b16 %v596, %v594
      %v663 = vpack.c.b16 %v597, %v595
      %v664 = vpack.c.b16 %v600, %v598
      %v665 = vpack.c.b16 %v601, %v599
      %v666 = vpack.c.b16 %v604, %v602
      %v667 = vpack.c.b16 %v605, %v603
      %v668 = vpack.c.b16 %v608, %v606
      %v669 = vpack.c.b16 %v609, %v607
      %v670 = vpack.c.b16 %v612, %v610
      %v671 = vpack.c.b16 %v613, %v611
      %v672 = vpack.c.b16 %v616, %v614
      %v673 = vpack.c.b16 %v617, %v615
      %v674 = vpack.c.b16 %v620, %v618
      %v675 = vpack.c.b16 %v621, %v619
      %v676 = vpack.c.b16 %v624, %v622
      %v677 = vpack.c.b16 %v625, %v623
      %v678 = vpack.c.b16 %v628, %v626
      %v679 = vpack.c.b16 %v629, %v627
      %v680 = vpack.c.b16 %v632, %v630
      %v681 = vpack.c.b16 %v633, %v631
      %730 = vmatprep.subr.bf16.mxu0 %v649
      %731 = vmatpush1.bf16.msra.mxu0 %v648
      %732 = vmatprep.subr.bf16.mxu0 %v647
      %733 = vmatpush1.bf16.msra.mxu0 %v646
      %734 = vmatprep.subr.bf16.mxu0 %v645
      %735 = vmatpush1.bf16.msra.mxu0 %v644
      %736 = vmatprep.subr.bf16.mxu0 %v643
      %737 = vmatpush1.bf16.msra.mxu0 %v642
      %738 = vmatprep.subr.bf16.mxu0 %v641
      %739 = vmatpush1.bf16.msra.mxu0 %v640
      %740 = vmatprep.subr.bf16.mxu0 %v639
      %741 = vmatpush1.bf16.msra.mxu0 %v638
      %742 = vmatprep.subr.bf16.mxu0 %v637
      %743 = vmatpush1.bf16.msra.mxu0 %v636
      %744 = vmatprep.subr.bf16.mxu0 %v635
      %745 = vmatpush1.bf16.msra.mxu0 %v634
      %746 = vmatprep.subr.bf16.mxu0 %v665
      %747 = vmatpush2.bf16.msra.mxu0 %v664
      %748 = vmatprep.subr.bf16.mxu0 %v663
      %749 = vmatpush2.bf16.msra.mxu0 %v662
      %750 = vmatprep.subr.bf16.mxu0 %v661
      %751 = vmatpush2.bf16.msra.mxu0 %v660
      %752 = vmatprep.subr.bf16.mxu0 %v659
      %753 = vmatpush2.bf16.msra.mxu0 %v658
      %754 = vmatprep.subr.bf16.mxu0 %v657
      %755 = vmatpush2.bf16.msra.mxu0 %v656
      %756 = vmatprep.subr.bf16.mxu0 %v655
      %757 = vmatpush2.bf16.msra.mxu0 %v654
      %758 = vmatprep.subr.bf16.mxu0 %v653
      %759 = vmatpush2.bf16.msra.mxu0 %v652
      %760 = vmatprep.subr.bf16.mxu0 %v651
      %761 = vmatpush2.bf16.msra.mxu0 %v650
      %762 = vmatprep.mubr.bf16.mxu0 %v403
      %763 = vmatmul.mubr.bf16.gmra.mxu0 %v388
      %v764 = vpop.f32.mrf.mxu0
      %v765 = vadd.f32 %v483, %v764
      %v766 = vpop.f32.mrf.mxu0
      %v767 = vadd.f32 %v487, %v766
      %v768 = vpop.f32.mrf.mxu0
      %v769 = vadd.f32 %v483, %v768
      %v770 = vpop.f32.mrf.mxu0
      %v771 = vadd.f32 %v487, %v770
      %772 = vmatprep.mubr.bf16.mxu0 %v411
      %773 = vmatmul.mubr.bf16.gmra.mxu0 %v389
      %v774 = vpop.f32.mrf.mxu0
      %v775 = vadd.f32 %v483, %v774
      %v776 = vpop.f32.mrf.mxu0
      %v777 = vadd.f32 %v487, %v776
      %v778 = vpop.f32.mrf.mxu0
      %v779 = vadd.f32 %v483, %v778
      %v780 = vpop.f32.mrf.mxu0
      %v781 = vadd.f32 %v487, %v780
      %782 = vmatprep.mubr.bf16.mxu0 %v414
      %783 = vmatmul.mubr.bf16.gmra.mxu0 %v390
      %v784 = vpop.f32.mrf.mxu0
      %v785 = vadd.f32 %v483, %v784
      %v786 = vpop.f32.mrf.mxu0
      %v787 = vadd.f32 %v487, %v786
      %v788 = vpop.f32.mrf.mxu0
      %v789 = vpop.f32.mrf.mxu0
      %790 = vdwg.mxu0
      %791 = vmatprep.subr.bf16.mxu0 %v681
      %792 = vmatpush1.bf16.msra.mxu0 %v680
      %793 = vmatprep.subr.bf16.mxu0 %v679
      %794 = vmatpush1.bf16.msra.mxu0 %v678
      %795 = vmatprep.subr.bf16.mxu0 %v677
      %796 = vmatpush1.bf16.msra.mxu0 %v676
      %797 = vmatprep.subr.bf16.mxu0 %v675
      %798 = vmatpush1.bf16.msra.mxu0 %v674
      %799 = vmatprep.subr.bf16.mxu0 %v673
      %800 = vmatpush1.bf16.msra.mxu0 %v672
      %801 = vmatprep.subr.bf16.mxu0 %v671
      %802 = vmatpush1.bf16.msra.mxu0 %v670
      %803 = vmatprep.subr.bf16.mxu0 %v669
      %804 = vmatpush1.bf16.msra.mxu0 %v668
      %805 = vmatprep.subr.bf16.mxu0 %v667
      %806 = vmatpush1.bf16.msra.mxu0 %v666
      %807 = vmatprep.subr.bf16.mxu0 0
      %808 = vmatpush2.bf16.msra.mxu0 0
      %809 = vmatprep.subr.bf16.mxu0 0
      %810 = vmatpush2.bf16.msra.mxu0 0
      %811 = vmatprep.subr.bf16.mxu0 0
      %812 = vmatpush2.bf16.msra.mxu0 0
      %813 = vmatprep.subr.bf16.mxu0 0
      %814 = vmatpush2.bf16.msra.mxu0 0
      %815 = vmatprep.subr.bf16.mxu0 0
      %816 = vmatpush2.bf16.msra.mxu0 0
      %817 = vmatprep.subr.bf16.mxu0 0
      %818 = vmatpush2.bf16.msra.mxu0 0
      %819 = vmatprep.subr.bf16.mxu0 0
      %820 = vmatpush2.bf16.msra.mxu0 0
      %821 = vmatprep.subr.bf16.mxu0 0
      %822 = vmatpush2.bf16.msra.mxu0 0
      %823 = vmatprep.mubr.bf16.mxu0 0
      %824 = vmatmul.mubr.bf16.gmra.mxu0 %v424
      %v825 = vpop.f32.mrf.mxu0
      %v826 = vadd.f32 %v765, %v825
      %v827 = vpop.f32.mrf.mxu0
      %v828 = vadd.f32 %v767, %v827
      %v829 = vpop.f32.mrf.mxu0
      %v830 = vadd.f32 %v769, %v829
      %v831 = vpop.f32.mrf.mxu0
      %v832 = vadd.f32 %v771, %v831
      %833 = vmatprep.mubr.bf16.mxu0 0
      %834 = vmatmul.mubr.bf16.gmra.mxu0 %v426
      %v835 = vpop.f32.mrf.mxu0
      %v836 = vadd.f32 %v775, %v835
      %v837 = vpop.f32.mrf.mxu0
      %v838 = vadd.f32 %v777, %v837
      %v839 = vpop.f32.mrf.mxu0
      %v840 = vadd.f32 %v779, %v839
      %v841 = vpop.f32.mrf.mxu0
      %v842 = vadd.f32 %v781, %v841
      %843 = vmatprep.mubr.bf16.mxu0 0
      %844 = vmatmul.mubr.bf16.gmra.mxu0 %v425
      %v845 = vpop.f32.mrf.mxu0
      %v846 = vadd.f32 %v785, %v845
      %v847 = vpop.f32.mrf.mxu0
      %v848 = vadd.f32 %v787, %v847
      %v849 = vpop.f32.mrf.mxu0
      %v850 = vpop.f32.mrf.mxu0
      %851 = vdwg.mxu0
      %v852 = vmax.f32 %v826, 0.0
      %v853 = vmax.f32 %v828, 0.0
      %v854 = vmax.f32 %v830, 0.0
      %v855 = vmax.f32 %v832, 0.0
      %v856 = vmax.f32 %v836, 0.0
      %v857 = vmax.f32 %v838, 0.0
      %v858 = vmax.f32 %v840, 0.0
      %v859 = vmax.f32 %v842, 0.0
      %v860 = vmax.f32 %v846, 0.0
      %v861 = vmax.f32 %v848, 0.0
      %s862 = smul.u32 %s22, 32
      %s863 = ssub.s32 %s862, 1
      %v864 = vlaneseq
      %v865 = vshrl.u32 %v864, 7
      %v866 = vadd.s32 %v865, 8
      %v867 = vadd.s32 %v865, 16
      %v868 = vadd.s32 %v865, 24
      %v869 = vadd.s32 %v865, 32
      %v870 = vstv %s863
      %v871 = vadd.s32 %v870, %v865
      %v872 = vadd.s32 %v870, %v866
      %v873 = vadd.s32 %v870, %v867
      %v874 = vadd.s32 %v870, %v868
      %v875 = vadd.s32 %v870, %v869
      %vm876 = vcmp.ge.s32.totalorder %v871, 0
      %vm877 = vcmp.ge.s32.totalorder %v872, 0
      %vm878 = vcmp.ge.s32.totalorder %v873, 0
      %vm879 = vcmp.ge.s32.totalorder %v874, 0
      %vm880 = vcmp.ge.s32.totalorder %v875, 0
      %vm881 = vcmp.lt.s32.totalorder %v871, 32
      %vm882 = vcmp.lt.s32.totalorder %v872, 32
      %vm883 = vcmp.lt.s32.totalorder %v873, 32
      %vm884 = vcmp.lt.s32.totalorder %v874, 32
      %vm885 = vcmp.lt.s32.totalorder %v875, 32
      %vm886 = vmand %vm876, %vm881
      %vm887 = vmand %vm877, %vm882
      %vm888 = vmand %vm878, %vm883
      %vm889 = vmand %vm879, %vm884
      %vm890 = vmand %vm880, %vm885
      %v891 = vsel %vm886, 1, 0
      %v892 = vsel %vm887, 1, 0
      %v893 = vsel %vm888, 1, 0
      %v894 = vsel %vm889, 1, 0
      %v895 = vsel %vm890, 1, 0
      %vm896 = vcmp.eq.s32.totalorder %v891, 1
      %vm897 = vcmp.eq.s32.totalorder %v892, 1
      %vm898 = vcmp.eq.s32.totalorder %v893, 1
      %vm899 = vcmp.eq.s32.totalorder %v894, 1
      %vm900 = vcmp.eq.s32.totalorder %v895, 1
      %v901 = vsel %vm896, %v852, 0.0
      %v902 = vsel %vm896, %v853, 0.0
      %v903 = vsel %vm897, %v854, 0.0
      %v904 = vsel %vm897, %v855, 0.0
      %v905 = vsel %vm898, %v856, 0.0
      %v906 = vsel %vm898, %v857, 0.0
      %v907 = vsel %vm899, %v858, 0.0
      %v908 = vsel %vm899, %v859, 0.0
      %v909 = vsel %vm900, %v860, 0.0
      %v910 = vsel %vm900, %v861, 0.0
      %v911 = vpack.c.bf16 %v903, %v901
      %v912 = vpack.c.bf16 %v904, %v902
      %v913 = vpack.c.bf16 %v907, %v905
      %v914 = vpack.c.bf16 %v908, %v906
      %v915 = vpack.c.bf16 %v909, %v909
      %v916 = vpack.c.bf16 %v910, %v910
      %v917 = vld [vmem:[%s4] sm:$0xf]
      %v918 = vld [vmem:[%s4 + $0x4] sm:$0xf]
      %v919 = vld [vmem:[%s4 + $0x8] sm:$0xf]
      %v920 = vld [vmem:[%s4 + $0xc] sm:$0xf]
      %v921 = vld [vmem:[%s4 + $0x10] sm:$0xf]
      %v922 = vld [vmem:[%s4 + $0x14] sm:$0xf]
      %v923 = vld [vmem:[%s4 + $0x18] sm:$0xf]
      %v924 = vld [vmem:[%s4 + $0x1c] sm:$0xf]
      %v925 = vld [vmem:[%s4 + $0x20] sm:$0xf]
      %v926 = vld [vmem:[%s4 + $0x24] sm:$0xf]
      %v927 = vld [vmem:[%s4 + $0x28] sm:$0xf]
      %v928 = vld [vmem:[%s4 + $0x2c] sm:$0xf]
      %v929 = vld [vmem:[%s4 + $0x30] sm:$0xf]
      %v930 = vld [vmem:[%s4 + $0x34] sm:$0xf]
      %v931 = vld [vmem:[%s4 + $0x38] sm:$0xf]
      %v932 = vld [vmem:[%s4 + $0x3c] sm:$0xf]
      %v933 = vld [vmem:[%s4 + $0x40] sm:$0xf]
      %v934 = vld [vmem:[%s4 + $0x44] sm:$0xf]
      %v935 = vld [vmem:[%s4 + $0x48] sm:$0xf]
      %v936 = vld [vmem:[%s4 + $0x4c] sm:$0xf]
      %v937 = vld [vmem:[%s4 + $0x50] sm:$0xf]
      %v938 = vld [vmem:[%s4 + $0x54] sm:$0xf]
      %v939 = vld [vmem:[%s4 + $0x58] sm:$0xf]
      %v940 = vld [vmem:[%s4 + $0x5c] sm:$0xf]
      %v941 = vld [vmem:[%s4 + $0x60] sm:$0xf]
      %v942 = vld [vmem:[%s4 + $0x64] sm:$0xf]
      %v943 = vld [vmem:[%s4 + $0x68] sm:$0xf]
      %v944 = vld [vmem:[%s4 + $0x6c] sm:$0xf]
      %v945 = vld [vmem:[%s4 + $0x70] sm:$0xf]
      %v946 = vld [vmem:[%s4 + $0x74] sm:$0xf]
      %v947 = vld [vmem:[%s4 + $0x78] sm:$0xf]
      %v948 = vld [vmem:[%s4 + $0x7c] sm:$0xf]
      %s949 = scalar_lea.vmem %s4, 128
      %v950 = vld [vmem:[%s949] sm:$0xf]
      %v951 = vld [vmem:[%s949 + $0x4] sm:$0xf]
      %v952 = vld [vmem:[%s949 + $0x8] sm:$0xf]
      %v953 = vld [vmem:[%s949 + $0xc] sm:$0xf]
      %v954 = vld [vmem:[%s949 + $0x10] sm:$0xf]
      %v955 = vld [vmem:[%s949 + $0x14] sm:$0xf]
      %v956 = vld [vmem:[%s949 + $0x18] sm:$0xf]
      %v957 = vld [vmem:[%s949 + $0x1c] sm:$0xf]
      %v958 = vld [vmem:[%s949 + $0x20] sm:$0xf]
      %v959 = vld [vmem:[%s949 + $0x24] sm:$0xf]
      %v960 = vld [vmem:[%s949 + $0x28] sm:$0xf]
      %v961 = vld [vmem:[%s949 + $0x2c] sm:$0xf]
      %v962 = vld [vmem:[%s949 + $0x30] sm:$0xf]
      %v963 = vld [vmem:[%s949 + $0x34] sm:$0xf]
      %v964 = vld [vmem:[%s949 + $0x38] sm:$0xf]
      %v965 = vld [vmem:[%s949 + $0x3c] sm:$0xf]
      %v966 = vld [vmem:[%s949 + $0x40] sm:$0xf]
      %v967 = vld [vmem:[%s949 + $0x44] sm:$0xf]
      %v968 = vld [vmem:[%s949 + $0x48] sm:$0xf]
      %v969 = vld [vmem:[%s949 + $0x4c] sm:$0xf]
      %v970 = vld [vmem:[%s949 + $0x50] sm:$0xf]
      %v971 = vld [vmem:[%s949 + $0x54] sm:$0xf]
      %v972 = vld [vmem:[%s949 + $0x58] sm:$0xf]
      %v973 = vld [vmem:[%s949 + $0x5c] sm:$0xf]
      %v974 = vld [vmem:[%s949 + $0x60] sm:$0xf]
      %v975 = vld [vmem:[%s949 + $0x64] sm:$0xf]
      %v976 = vld [vmem:[%s949 + $0x68] sm:$0xf]
      %v977 = vld [vmem:[%s949 + $0x6c] sm:$0xf]
      %v978 = vld [vmem:[%s949 + $0x70] sm:$0xf]
      %v979 = vld [vmem:[%s949 + $0x74] sm:$0xf]
      %v980 = vld [vmem:[%s949 + $0x78] sm:$0xf]
      %v981 = vld [vmem:[%s949 + $0x7c] sm:$0xf]
      %v983 = vshrl.u32 %v911, 16
      %v985 = vshll.u32 %v911, 16
      %v987 = vrot.slane %v985, 1
      %v988 = vor.u32 %v983, %v987
      %v990 = vshll.u32 %v913, 16
      %v992 = vrot.slane %v990, 1
      %v993 = vsel %vm391, %v988, %v992
      %v995 = vshrl.u32 %v912, 16
      %v997 = vshll.u32 %v912, 16
      %v999 = vrot.slane %v997, 1
      %v1000 = vor.u32 %v995, %v999
      %v1002 = vshll.u32 %v914, 16
      %v1004 = vrot.slane %v1002, 1
      %v1005 = vsel %vm391, %v1000, %v1004
      %v1006 = vshrl.u32 %v913, 16
      %v1008 = vor.u32 %v1006, %v992
      %v1010 = vshll.u32 %v915, 16
      %v1012 = vrot.slane %v1010, 1
      %v1013 = vsel %vm391, %v1008, %v1012
      %v1014 = vshrl.u32 %v914, 16
      %v1016 = vor.u32 %v1014, %v1004
      %v1018 = vshll.u32 %v916, 16
      %v1020 = vrot.slane %v1018, 1
      %v1021 = vsel %vm391, %v1016, %v1020
      %v1058 = vunpack.c.l.b16 %v950
      %v1059 = vunpack.c.l.b16 %v951
      %v1060 = vunpack.c.l.b16 %v952
      %v1061 = vunpack.c.l.b16 %v953
      %v1062 = vunpack.c.l.b16 %v954
      %v1063 = vunpack.c.l.b16 %v955
      %v1064 = vunpack.c.l.b16 %v956
      %v1065 = vunpack.c.l.b16 %v957
      %v1066 = vunpack.c.l.b16 %v958
      %v1067 = vunpack.c.l.b16 %v959
      %v1068 = vunpack.c.l.b16 %v960
      %v1069 = vunpack.c.l.b16 %v961
      %v1070 = vunpack.c.l.b16 %v962
      %v1071 = vunpack.c.l.b16 %v963
      %v1072 = vunpack.c.l.b16 %v964
      %v1073 = vunpack.c.l.b16 %v965
      %v1074 = vunpack.c.l.b16 %v966
      %v1075 = vunpack.c.l.b16 %v967
      %v1076 = vunpack.c.l.b16 %v968
      %v1077 = vunpack.c.l.b16 %v969
      %v1078 = vunpack.c.l.b16 %v970
      %v1079 = vunpack.c.l.b16 %v971
      %v1080 = vunpack.c.l.b16 %v972
      %v1081 = vunpack.c.l.b16 %v973
      %v1082 = vunpack.c.l.b16 %v974
      %v1083 = vunpack.c.l.b16 %v975
      %v1084 = vunpack.c.l.b16 %v976
      %v1085 = vunpack.c.l.b16 %v977
      %v1086 = vunpack.c.l.b16 %v978
      %v1087 = vunpack.c.l.b16 %v979
      %v1088 = vunpack.c.l.b16 %v980
      %v1089 = vunpack.c.l.b16 %v981
      %v1090 = vpack.c.b16 %v1059, %v1058
      %v1091 = vpack.c.b16 %v1061, %v1060
      %v1092 = vpack.c.b16 %v1063, %v1062
      %v1093 = vpack.c.b16 %v1065, %v1064
      %v1094 = vpack.c.b16 %v1067, %v1066
      %v1095 = vpack.c.b16 %v1069, %v1068
      %v1096 = vpack.c.b16 %v1071, %v1070
      %v1097 = vpack.c.b16 %v1073, %v1072
      %v1098 = vpack.c.b16 %v1075, %v1074
      %v1099 = vpack.c.b16 %v1077, %v1076
      %v1100 = vpack.c.b16 %v1079, %v1078
      %v1101 = vpack.c.b16 %v1081, %v1080
      %v1102 = vpack.c.b16 %v1083, %v1082
      %v1103 = vpack.c.b16 %v1085, %v1084
      %v1104 = vpack.c.b16 %v1087, %v1086
      %v1105 = vpack.c.b16 %v1089, %v1088
      %1122 = vmatprep.subr.bf16.mxu0 0
      %1123 = vmatpush1.bf16.msra.mxu0 %v1097
      %1124 = vmatprep.subr.bf16.mxu0 0
      %1125 = vmatpush1.bf16.msra.mxu0 %v1096
      %1126 = vmatprep.subr.bf16.mxu0 0
      %1127 = vmatpush1.bf16.msra.mxu0 %v1095
      %1128 = vmatprep.subr.bf16.mxu0 0
      %1129 = vmatpush1.bf16.msra.mxu0 %v1094
      %1130 = vmatprep.subr.bf16.mxu0 0
      %1131 = vmatpush1.bf16.msra.mxu0 %v1093
      %1132 = vmatprep.subr.bf16.mxu0 0
      %1133 = vmatpush1.bf16.msra.mxu0 %v1092
      %1134 = vmatprep.subr.bf16.mxu0 0
      %1135 = vmatpush1.bf16.msra.mxu0 %v1091
      %1136 = vmatprep.subr.bf16.mxu0 0
      %1137 = vmatpush1.bf16.msra.mxu0 %v1090
      %1138 = vmatprep.subr.bf16.mxu0 0
      %1139 = vmatpush2.bf16.msra.mxu0 %v1105
      %1140 = vmatprep.subr.bf16.mxu0 0
      %1141 = vmatpush2.bf16.msra.mxu0 %v1104
      %1142 = vmatprep.subr.bf16.mxu0 0
      %1143 = vmatpush2.bf16.msra.mxu0 %v1103
      %1144 = vmatprep.subr.bf16.mxu0 0
      %1145 = vmatpush2.bf16.msra.mxu0 %v1102
      %1146 = vmatprep.subr.bf16.mxu0 0
      %1147 = vmatpush2.bf16.msra.mxu0 %v1101
      %1148 = vmatprep.subr.bf16.mxu0 0
      %1149 = vmatpush2.bf16.msra.mxu0 %v1100
      %1150 = vmatprep.subr.bf16.mxu0 0
      %1151 = vmatpush2.bf16.msra.mxu0 %v1099
      %1152 = vmatprep.subr.bf16.mxu0 0
      %1153 = vmatpush2.bf16.msra.mxu0 %v1098
      %1154 = vmatprep.mubr.bf16.mxu0 %v1005
      %1155 = vmatmul.mubr.bf16.gmra.mxu0 %v993
      %v1156 = vpop.f32.mrf.mxu0
      %v1157 = vadd.f32 0.0, %v1156
      %v1158 = vpop.f32.mrf.mxu0
      %v1159 = vpop.f32.mrf.mxu0
      %v1160 = vadd.f32 0.0, %v1159
      %v1161 = vpop.f32.mrf.mxu0
      %1162 = vmatprep.mubr.bf16.mxu0 %v1021
      %1163 = vmatmul.mubr.bf16.gmra.mxu0 %v1013
      %v1164 = vpop.f32.mrf.mxu0
      %v1165 = vadd.f32 0.0, %v1164
      %v1166 = vpop.f32.mrf.mxu0
      %v1167 = vpop.f32.mrf.mxu0
      %v1168 = vadd.f32 0.0, %v1167
      %v1169 = vpop.f32.mrf.mxu0
      %1170 = vdwg.mxu0
      %v1203 = vunpack.c.l.b16 %v917
      %v1204 = vunpack.c.l.b16 %v918
      %v1205 = vunpack.c.l.b16 %v919
      %v1206 = vunpack.c.l.b16 %v920
      %v1207 = vunpack.c.l.b16 %v921
      %v1208 = vunpack.c.l.b16 %v922
      %v1209 = vunpack.c.l.b16 %v923
      %v1210 = vunpack.c.l.b16 %v924
      %v1211 = vunpack.c.l.b16 %v925
      %v1212 = vunpack.c.l.b16 %v926
      %v1213 = vunpack.c.l.b16 %v927
      %v1214 = vunpack.c.l.b16 %v928
      %v1215 = vunpack.c.l.b16 %v929
      %v1216 = vunpack.c.l.b16 %v930
      %v1217 = vunpack.c.l.b16 %v931
      %v1218 = vunpack.c.l.b16 %v932
      %v1219 = vunpack.c.l.b16 %v933
      %v1220 = vunpack.c.l.b16 %v934
      %v1221 = vunpack.c.l.b16 %v935
      %v1222 = vunpack.c.l.b16 %v936
      %v1223 = vunpack.c.l.b16 %v937
      %v1224 = vunpack.c.l.b16 %v938
      %v1225 = vunpack.c.l.b16 %v939
      %v1226 = vunpack.c.l.b16 %v940
      %v1227 = vunpack.c.l.b16 %v941
      %v1228 = vunpack.c.l.b16 %v942
      %v1229 = vunpack.c.l.b16 %v943
      %v1230 = vunpack.c.l.b16 %v944
      %v1231 = vunpack.c.l.b16 %v945
      %v1232 = vunpack.c.l.b16 %v946
      %v1233 = vunpack.c.l.b16 %v947
      %v1234 = vunpack.c.l.b16 %v948
      %v1235 = vpack.c.b16 %v1204, %v1203
      %v1236 = vpack.c.b16 %v1206, %v1205
      %v1237 = vpack.c.b16 %v1208, %v1207
      %v1238 = vpack.c.b16 %v1210, %v1209
      %v1239 = vpack.c.b16 %v1212, %v1211
      %v1240 = vpack.c.b16 %v1214, %v1213
      %v1241 = vpack.c.b16 %v1216, %v1215
      %v1242 = vpack.c.b16 %v1218, %v1217
      %v1243 = vpack.c.b16 %v1220, %v1219
      %v1244 = vpack.c.b16 %v1222, %v1221
      %v1245 = vpack.c.b16 %v1224, %v1223
      %v1246 = vpack.c.b16 %v1226, %v1225
      %v1247 = vpack.c.b16 %v1228, %v1227
      %v1248 = vpack.c.b16 %v1230, %v1229
      %v1249 = vpack.c.b16 %v1232, %v1231
      %v1250 = vpack.c.b16 %v1234, %v1233
      %1267 = vmatprep.subr.bf16.mxu0 0
      %1268 = vmatpush1.bf16.msra.mxu0 %v1242
      %1269 = vmatprep.subr.bf16.mxu0 0
      %1270 = vmatpush1.bf16.msra.mxu0 %v1241
      %1271 = vmatprep.subr.bf16.mxu0 0
      %1272 = vmatpush1.bf16.msra.mxu0 %v1240
      %1273 = vmatprep.subr.bf16.mxu0 0
      %1274 = vmatpush1.bf16.msra.mxu0 %v1239
      %1275 = vmatprep.subr.bf16.mxu0 0
      %1276 = vmatpush1.bf16.msra.mxu0 %v1238
      %1277 = vmatprep.subr.bf16.mxu0 0
      %1278 = vmatpush1.bf16.msra.mxu0 %v1237
      %1279 = vmatprep.subr.bf16.mxu0 0
      %1280 = vmatpush1.bf16.msra.mxu0 %v1236
      %1281 = vmatprep.subr.bf16.mxu0 0
      %1282 = vmatpush1.bf16.msra.mxu0 %v1235
      %1283 = vmatprep.subr.bf16.mxu0 0
      %1284 = vmatpush2.bf16.msra.mxu0 %v1250
      %1285 = vmatprep.subr.bf16.mxu0 0
      %1286 = vmatpush2.bf16.msra.mxu0 %v1249
      %1287 = vmatprep.subr.bf16.mxu0 0
      %1288 = vmatpush2.bf16.msra.mxu0 %v1248
      %1289 = vmatprep.subr.bf16.mxu0 0
      %1290 = vmatpush2.bf16.msra.mxu0 %v1247
      %1291 = vmatprep.subr.bf16.mxu0 0
      %1292 = vmatpush2.bf16.msra.mxu0 %v1246
      %1293 = vmatprep.subr.bf16.mxu0 0
      %1294 = vmatpush2.bf16.msra.mxu0 %v1245
      %1295 = vmatprep.subr.bf16.mxu0 0
      %1296 = vmatpush2.bf16.msra.mxu0 %v1244
      %1297 = vmatprep.subr.bf16.mxu0 0
      %1298 = vmatpush2.bf16.msra.mxu0 %v1243
      %1299 = vmatprep.mubr.bf16.mxu0 %v912
      %1300 = vmatmul.mubr.bf16.gmra.mxu0 %v911
      %v1301 = vpop.f32.mrf.mxu0
      %v1302 = vadd.f32 %v1157, %v1301
      %v1303 = vpop.f32.mrf.mxu0
      %v1304 = vpop.f32.mrf.mxu0
      %v1305 = vadd.f32 %v1160, %v1304
      %v1306 = vpop.f32.mrf.mxu0
      %1307 = vmatprep.mubr.bf16.mxu0 %v914
      %1308 = vmatmul.mubr.bf16.gmra.mxu0 %v913
      %v1309 = vpop.f32.mrf.mxu0
      %v1310 = vadd.f32 %v1165, %v1309
      %v1311 = vpop.f32.mrf.mxu0
      %v1312 = vpop.f32.mrf.mxu0
      %v1313 = vadd.f32 %v1168, %v1312
      %v1314 = vpop.f32.mrf.mxu0
      %1315 = vdwg.mxu0
      %s1316 = scalar_lea.vmem %s4, 256
      %v1317 = vld [vmem:[%s1316] sm:$0xf]
      %v1318 = vld [vmem:[%s1316 + $0x4] sm:$0xf]
      %v1319 = vld [vmem:[%s1316 + $0x8] sm:$0xf]
      %v1320 = vld [vmem:[%s1316 + $0xc] sm:$0xf]
      %v1321 = vld [vmem:[%s1316 + $0x10] sm:$0xf]
      %v1322 = vld [vmem:[%s1316 + $0x14] sm:$0xf]
      %v1323 = vld [vmem:[%s1316 + $0x18] sm:$0xf]
      %v1324 = vld [vmem:[%s1316 + $0x1c] sm:$0xf]
      %v1325 = vld [vmem:[%s1316 + $0x20] sm:$0xf]
      %v1326 = vld [vmem:[%s1316 + $0x24] sm:$0xf]
      %v1327 = vld [vmem:[%s1316 + $0x28] sm:$0xf]
      %v1328 = vld [vmem:[%s1316 + $0x2c] sm:$0xf]
      %v1329 = vld [vmem:[%s1316 + $0x30] sm:$0xf]
      %v1330 = vld [vmem:[%s1316 + $0x34] sm:$0xf]
      %v1331 = vld [vmem:[%s1316 + $0x38] sm:$0xf]
      %v1332 = vld [vmem:[%s1316 + $0x3c] sm:$0xf]
      %v1333 = vld [vmem:[%s1316 + $0x40] sm:$0xf]
      %v1334 = vld [vmem:[%s1316 + $0x44] sm:$0xf]
      %v1335 = vld [vmem:[%s1316 + $0x48] sm:$0xf]
      %v1336 = vld [vmem:[%s1316 + $0x4c] sm:$0xf]
      %v1337 = vld [vmem:[%s1316 + $0x50] sm:$0xf]
      %v1338 = vld [vmem:[%s1316 + $0x54] sm:$0xf]
      %v1339 = vld [vmem:[%s1316 + $0x58] sm:$0xf]
      %v1340 = vld [vmem:[%s1316 + $0x5c] sm:$0xf]
      %v1341 = vld [vmem:[%s1316 + $0x60] sm:$0xf]
      %v1342 = vld [vmem:[%s1316 + $0x64] sm:$0xf]
      %v1343 = vld [vmem:[%s1316 + $0x68] sm:$0xf]
      %v1344 = vld [vmem:[%s1316 + $0x6c] sm:$0xf]
      %v1345 = vld [vmem:[%s1316 + $0x70] sm:$0xf]
      %v1346 = vld [vmem:[%s1316 + $0x74] sm:$0xf]
      %v1347 = vld [vmem:[%s1316 + $0x78] sm:$0xf]
      %v1348 = vld [vmem:[%s1316 + $0x7c] sm:$0xf]
      %v1355 = vrot.slane %v911, 1
      %v1356 = vrot.slane %v913, 1
      %v1357 = vsel %vm421, %v1355, %v1356
      %v1358 = vrot.slane %v912, 1
      %v1359 = vrot.slane %v914, 1
      %v1360 = vsel %vm421, %v1358, %v1359
      %v1361 = vrot.slane %v915, 1
      %v1362 = vsel %vm421, %v1356, %v1361
      %v1363 = vrot.slane %v916, 1
      %v1364 = vsel %vm421, %v1359, %v1363
      %v1401 = vunpack.c.l.b16 %v1317
      %v1402 = vunpack.c.l.b16 %v1318
      %v1403 = vunpack.c.l.b16 %v1319
      %v1404 = vunpack.c.l.b16 %v1320
      %v1405 = vunpack.c.l.b16 %v1321
      %v1406 = vunpack.c.l.b16 %v1322
      %v1407 = vunpack.c.l.b16 %v1323
      %v1408 = vunpack.c.l.b16 %v1324
      %v1409 = vunpack.c.l.b16 %v1325
      %v1410 = vunpack.c.l.b16 %v1326
      %v1411 = vunpack.c.l.b16 %v1327
      %v1412 = vunpack.c.l.b16 %v1328
      %v1413 = vunpack.c.l.b16 %v1329
      %v1414 = vunpack.c.l.b16 %v1330
      %v1415 = vunpack.c.l.b16 %v1331
      %v1416 = vunpack.c.l.b16 %v1332
      %v1417 = vunpack.c.l.b16 %v1333
      %v1418 = vunpack.c.l.b16 %v1334
      %v1419 = vunpack.c.l.b16 %v1335
      %v1420 = vunpack.c.l.b16 %v1336
      %v1421 = vunpack.c.l.b16 %v1337
      %v1422 = vunpack.c.l.b16 %v1338
      %v1423 = vunpack.c.l.b16 %v1339
      %v1424 = vunpack.c.l.b16 %v1340
      %v1425 = vunpack.c.l.b16 %v1341
      %v1426 = vunpack.c.l.b16 %v1342
      %v1427 = vunpack.c.l.b16 %v1343
      %v1428 = vunpack.c.l.b16 %v1344
      %v1429 = vunpack.c.l.b16 %v1345
      %v1430 = vunpack.c.l.b16 %v1346
      %v1431 = vunpack.c.l.b16 %v1347
      %v1432 = vunpack.c.l.b16 %v1348
      %v1433 = vpack.c.b16 %v1402, %v1401
      %v1434 = vpack.c.b16 %v1404, %v1403
      %v1435 = vpack.c.b16 %v1406, %v1405
      %v1436 = vpack.c.b16 %v1408, %v1407
      %v1437 = vpack.c.b16 %v1410, %v1409
      %v1438 = vpack.c.b16 %v1412, %v1411
      %v1439 = vpack.c.b16 %v1414, %v1413
      %v1440 = vpack.c.b16 %v1416, %v1415
      %v1441 = vpack.c.b16 %v1418, %v1417
      %v1442 = vpack.c.b16 %v1420, %v1419
      %v1443 = vpack.c.b16 %v1422, %v1421
      %v1444 = vpack.c.b16 %v1424, %v1423
      %v1445 = vpack.c.b16 %v1426, %v1425
      %v1446 = vpack.c.b16 %v1428, %v1427
      %v1447 = vpack.c.b16 %v1430, %v1429
      %v1448 = vpack.c.b16 %v1432, %v1431
      %1465 = vmatprep.subr.bf16.mxu0 0
      %1466 = vmatpush1.bf16.msra.mxu0 %v1440
      %1467 = vmatprep.subr.bf16.mxu0 0
      %1468 = vmatpush1.bf16.msra.mxu0 %v1439
      %1469 = vmatprep.subr.bf16.mxu0 0
      %1470 = vmatpush1.bf16.msra.mxu0 %v1438
      %1471 = vmatprep.subr.bf16.mxu0 0
      %1472 = vmatpush1.bf16.msra.mxu0 %v1437
      %1473 = vmatprep.subr.bf16.mxu0 0
      %1474 = vmatpush1.bf16.msra.mxu0 %v1436
      %1475 = vmatprep.subr.bf16.mxu0 0
      %1476 = vmatpush1.bf16.msra.mxu0 %v1435
      %1477 = vmatprep.subr.bf16.mxu0 0
      %1478 = vmatpush1.bf16.msra.mxu0 %v1434
      %1479 = vmatprep.subr.bf16.mxu0 0
      %1480 = vmatpush1.bf16.msra.mxu0 %v1433
      %1481 = vmatprep.subr.bf16.mxu0 0
      %1482 = vmatpush2.bf16.msra.mxu0 %v1448
      %1483 = vmatprep.subr.bf16.mxu0 0
      %1484 = vmatpush2.bf16.msra.mxu0 %v1447
      %1485 = vmatprep.subr.bf16.mxu0 0
      %1486 = vmatpush2.bf16.msra.mxu0 %v1446
      %1487 = vmatprep.subr.bf16.mxu0 0
      %1488 = vmatpush2.bf16.msra.mxu0 %v1445
      %1489 = vmatprep.subr.bf16.mxu0 0
      %1490 = vmatpush2.bf16.msra.mxu0 %v1444
      %1491 = vmatprep.subr.bf16.mxu0 0
      %1492 = vmatpush2.bf16.msra.mxu0 %v1443
      %1493 = vmatprep.subr.bf16.mxu0 0
      %1494 = vmatpush2.bf16.msra.mxu0 %v1442
      %1495 = vmatprep.subr.bf16.mxu0 0
      %1496 = vmatpush2.bf16.msra.mxu0 %v1441
      %1497 = vmatprep.mubr.bf16.mxu0 %v1360
      %1498 = vmatmul.mubr.bf16.gmra.mxu0 %v1357
      %v1499 = vpop.f32.mrf.mxu0
      %v1500 = vadd.f32 0.0, %v1499
      %v1501 = vpop.f32.mrf.mxu0
      %v1502 = vpop.f32.mrf.mxu0
      %v1503 = vadd.f32 0.0, %v1502
      %v1504 = vpop.f32.mrf.mxu0
      %1505 = vmatprep.mubr.bf16.mxu0 %v1364
      %1506 = vmatmul.mubr.bf16.gmra.mxu0 %v1362
      %v1507 = vpop.f32.mrf.mxu0
      %v1508 = vadd.f32 0.0, %v1507
      %v1509 = vpop.f32.mrf.mxu0
      %v1510 = vpop.f32.mrf.mxu0
      %v1511 = vadd.f32 0.0, %v1510
      %v1512 = vpop.f32.mrf.mxu0
      %1513 = vdwg.mxu0
      %v1514 = vadd.f32 %v1302, %v1500
      %v1515 = vadd.f32 %v1305, %v1503
      %v1516 = vadd.f32 %v1310, %v1508
      %v1517 = vadd.f32 %v1313, %v1511
      %v1518 = vld [vmem:[%s5] sm:$0x1]
      %v1520 = vlaneseq
      %v1521 = vshrl.u32 %v1520, 7
      %v1522 = vsub.s32 0, %v1521
      %v1523 = vrot.slane %v1518, %v1522
      %v1525 = vadd.f32 %v1514, %v1523
      %v1526 = vadd.f32 %v1515, %v1523
      %v1527 = vadd.f32 %v1516, %v1523
      %v1528 = vadd.f32 %v1517, %v1523
      %v1529 = vmax.f32 %v1525, 0.0
      %v1530 = vmax.f32 %v1526, 0.0
      %v1531 = vmax.f32 %v1527, 0.0
      %v1532 = vmax.f32 %v1528, 0.0
      %1533 = vst [vmem:[%s293] sm:$0xff] %v1529
      %1534 = vst [vmem:[%s293 + $0x8] sm:$0xff] %v1530
      %1535 = vst [vmem:[%s293 + $0x10] sm:$0xff] %v1531
      %1536 = vst [vmem:[%s293 + $0x18] sm:$0xff] %v1532
      %s1537 = smul.u32 4, %s22
      %p1538 = scmp.lt.s32.totalorder %s21, 1
      %s1539 = scalar_select %p1538, %s21, 1
      %p1540 = scmp.lt.s32.totalorder %s1537, 3
      %s1541 = scalar_select %p1540, %s1537, 3
      %s1542 = smul.addr %s1539, 4
      %s1543 = sadd.s32 %s1541, %s1542
      %s1544 = smul.addr %s1543, 8
      %s1545 = scalar_lea.vmem %s6, %s1544
      // Predicated region
      $region45: #{decoder_block_forward.1} parent=43 // pred_check
        %p1546 = pneg %p185
      $region46: #{decoder_block_forward.1} parent=43 // pred_check_branch
        %1548 = sbr.rel (%p1546) target = $region48
      $region47: #{decoder_block_forward.1} parent=43 // pred_region
        %s1549 = smul.u32 4, %s22
      $region48: #{decoder_block_forward.1} parent=43 // pred_fallthru
        _
    $region44: #{decoder_block_forward.1} parent=5 // pred_fallthru
      _
    %p1550 = scmp.le.s32.totalorder 2, %s12
    // Predicated region
    $region49: #{decoder_block_forward.1} parent=5 // pred_check
      %p1551 = pneg %p1550
    $region50: #{decoder_block_forward.1} parent=5 // pred_check_branch
      %1553 = sbr.rel (%p1551) target = $region52
    $region51: #{decoder_block_forward.1} parent=5 // pred_region
      %s1554 = ssub.s32 %s12, 2
      // Predicated region
      $region53: #{decoder_block_forward.1} parent=51 // pred_check
        %p1555 = pneg %p191
      $region54: #{decoder_block_forward.1} parent=51 // pred_check_branch
        %1557 = sbr.rel (%p1555) target = $region56
      $region55: #{decoder_block_forward.1} parent=51 // pred_region
        %s1558 = smul.u32 4, %s24
        %p1559 = scmp.lt.s32.totalorder %s23, 1
        %s1560 = scalar_select %p1559, %s23, 1
        %p1561 = scmp.lt.s32.totalorder %s1558, 3
        %s1562 = scalar_select %p1561, %s1558, 3
        %s1563 = smul.addr %s1560, 4
        %s1564 = sadd.s32 %s1562, %s1563
        %s1565 = smul.addr %s1564, 8
        %s1566 = scalar_lea.vmem %s6, %s1565
      $region56: #{decoder_block_forward.1} parent=51 // pred_fallthru
        _
    $region52: #{decoder_block_forward.1} parent=5 // pred_fallthru
      _
  $region6: #{decoder_block_forward.1} parent=0 // loop_footer
    %s16 = sadd.s32 1, %s12
  $region7: #{decoder_block_forward.1} parent=0 // loop_footer_branch
    %11 = sbr.rel target = $region3
  $region8: #{decoder_block_forward.1} parent=0 // loop_exit
    _

</llo_original>
